<compile_context>
chip_gen: v7x
topology: tpu7x:2x2x1
jax: 0.10.0
libtpu: 0.0.40
codegen_flags: <defaults>
</compile_context>

<pallas_src>
import functools

import jax
import jax.numpy as jnp
from jax.experimental import pallas as pl
from jax.experimental.pallas import tpu as pltpu


_MXU_DTYPE = jnp.bfloat16          # MXU operand dtype (set to f32 for bit-close numerics)
_VMEM_LIMIT = 32 * 1024 * 1024     # scoped VMEM: >= v5e default, == v6e/v7x default
_MM_LANE_TILE = 512                # pixel-axis (lane) tile for the matmul kernels
_EW_LANE_TILE = 1024               # lane tile for the elementwise kernels


def _pick_lane_tile(length, cap):
    """Largest tile <= cap that is a multiple of 128 and divides `length`.

    Falls back to the full extent when length is not 128-aligned (legal,
    since a block dim equal to the full array dim is always allowed)."""
    if length >= 128 and length % 128 == 0:
        t = min(cap, length)
        t -= t % 128
        while length % t:
            t -= 128
        return t
    return length


def _compiler_params():
    return pltpu.CompilerParams(
        dimension_semantics=("parallel",),
        vmem_limit_bytes=_VMEM_LIMIT,
    )


# ----------------------------------------------------------------------------
# Pallas kernels
# ----------------------------------------------------------------------------
def _make_mm_kernel(has_scale, has_add, relu):
    """Fused (Cout, K) @ (K, tn) MXU matmul with affine/add/relu epilogue."""
    def kernel(*refs):
        it = iter(refs)
        w_ref = next(it)
        x_ref = next(it)
        s_ref = next(it) if has_scale else None
        t_ref = next(it)
        a_ref = next(it) if has_add else None
        o_ref = next(it)

        acc = jnp.dot(w_ref[...], x_ref[...],
                      preferred_element_type=jnp.float32)
        if has_scale:
            acc = acc * s_ref[...]
        acc = acc + t_ref[...]                       # folded conv-bias / BN shift
        if has_add:
            acc = acc + a_ref[...]                   # fused residual addend
        if relu:
            acc = jnp.maximum(acc, 0.0)
        o_ref[...] = acc.astype(o_ref.dtype)
    return kernel


def _avg4_kernel(a_ref, b_ref, c_ref, d_ref, o_ref):
    # 2x2 average pooling on pre-sliced window corners.
    o_ref[...] = (a_ref[...] + b_ref[...] + c_ref[...] + d_ref[...]) * 0.25


def _bilerp_kernel(x00_ref, x01_ref, x10_ref, x11_ref, wh_ref, ww_ref, o_ref):
    # Bilinear lerp; weights are (1, L) rows broadcast over the channel rows.
    ww = ww_ref[...]
    wh = wh_ref[...]
    top = x00_ref[...] + (x01_ref[...] - x00_ref[...]) * ww
    bot = x10_ref[...] + (x11_ref[...] - x10_ref[...]) * ww
    o_ref[...] = top + (bot - top) * wh


# ----------------------------------------------------------------------------
# Pallas call wrappers
# ----------------------------------------------------------------------------
def matmul_affine_T(w_nk, x_km, shift, *, scale=None, add=None, relu=False,
                    lane_tile=_MM_LANE_TILE):
    """out[c, m] = relu?( scale[c] * sum_k w[c,k] x[k,m] + shift[c] + add[c,m] ).

    Channel-major output (Cout, M): the pixel axis M = N*H*W is the lane axis,
    tiled and pipelined over a "parallel" grid -> lane-dense loads/stores."""
    Cout, K = w_nk.shape
    Kx, M = x_km.shape
    assert K == Kx, (w_nk.shape, x_km.shape)

    tn = _pick_lane_tile(M, lane_tile)
    grid = (M // tn,)

    wb = w_nk.astype(_MXU_DTYPE)
    xb = x_km.astype(_MXU_DTYPE)
    t2 = shift.reshape(Cout, 1).astype(jnp.float32)

    in_specs = [
        pl.BlockSpec((Cout, K), lambda j: (0, 0)),   # weights: VMEM-resident
        pl.BlockSpec((K, tn), lambda j: (0, j)),     # activations: pipelined
    ]
    args = [wb, xb]
    if scale is not None:
        in_specs.append(pl.BlockSpec((Cout, 1), lambda j: (0, 0)))
        args.append(scale.reshape(Cout, 1).astype(jnp.float32))
    in_specs.append(pl.BlockSpec((Cout, 1), lambda j: (0, 0)))
    args.append(t2)
    if add is not None:
        in_specs.append(pl.BlockSpec((Cout, tn), lambda j: (0, j)))
        args.append(add.reshape(Cout, M).astype(jnp.float32))

    kern = _make_mm_kernel(has_scale=scale is not None,
                           has_add=add is not None, relu=relu)

    return pl.pallas_call(
        kern,
        out_shape=jax.ShapeDtypeStruct((Cout, M), jnp.float32),
        grid=grid,
        in_specs=in_specs,
        out_specs=pl.BlockSpec((Cout, tn), lambda j: (0, j)),
        compiler_params=_compiler_params(),
    )(*args)


def avgpool2x2_cmajor(xc):
    """nn.AvgPool2d(2, 2) on a channel-major (C, N, H, W) tensor."""
    C, N, H, W = xc.shape
    Hp, Wp = H // 2, W // 2
    L = N * Hp * Wp
    # TODO(synk): the four 2x2-corner strided slices are still materialized by
    # XLA; a fully in-kernel reduction needs cross-lane pairing and is not
    # worth the complexity at these sizes.
    corners = [xc[:, :, 0::2, 0::2], xc[:, :, 0::2, 1::2],
               xc[:, :, 1::2, 0::2], xc[:, :, 1::2, 1::2]]
    corners = [c.reshape(C, L).astype(jnp.float32) for c in corners]
    tl = _pick_lane_tile(L, _EW_LANE_TILE)
    out = pl.pallas_call(
        _avg4_kernel,
        out_shape=jax.ShapeDtypeStruct((C, L), jnp.float32),
        grid=(L // tl,),
        in_specs=[pl.BlockSpec((C, tl), lambda j: (0, j))] * 4,
        out_specs=pl.BlockSpec((C, tl), lambda j: (0, j)),
        compiler_params=_compiler_params(),
    )(*corners)
    return out.reshape(C, N, Hp, Wp)


def bilinear_resize_cmajor(xc, out_h, out_w):
    """F.interpolate(..., mode='bilinear', align_corners=False) on (C, N, h, w)."""
    C, N, ih, iw = xc.shape

    def src_idx(out_s, in_s):
        i = jnp.arange(out_s, dtype=jnp.float32)
        src = jnp.maximum((in_s / out_s) * (i + 0.5) - 0.5, 0.0)
        i0 = jnp.minimum(jnp.floor(src).astype(jnp.int32), in_s - 1)
        i1 = jnp.minimum(i0 + 1, in_s - 1)
        frac = src - i0.astype(jnp.float32)
        return i0, i1, frac

    h0, h1, fh = src_idx(out_h, ih)
    w0, w1, fw = src_idx(out_w, iw)

    L = N * out_h * out_w
    # Corner gathers on the tiny source stay in XLA; the lerp runs lane-dense
    # in Pallas and only reads two (1, L) weight rows (no full broadcasts).
    x00 = xc[:, :, h0][:, :, :, w0].reshape(C, L).astype(jnp.float32)
    x01 = xc[:, :, h0][:, :, :, w1].reshape(C, L).astype(jnp.float32)
    x10 = xc[:, :, h1][:, :, :, w0].reshape(C, L).astype(jnp.float32)
    x11 = xc[:, :, h1][:, :, :, w1].reshape(C, L).astype(jnp.float32)
    wh = jnp.broadcast_to(fh[None, :, None], (N, out_h, out_w)).reshape(1, L)
    ww = jnp.broadcast_to(fw[None, None, :], (N, out_h, out_w)).reshape(1, L)

    tl = _pick_lane_tile(L, _EW_LANE_TILE)
    out = pl.pallas_call(
        _bilerp_kernel,
        out_shape=jax.ShapeDtypeStruct((C, L), jnp.float32),
        grid=(L // tl,),
        in_specs=[pl.BlockSpec((C, tl), lambda j: (0, j))] * 4
                 + [pl.BlockSpec((1, tl), lambda j: (0, j))] * 2,
        out_specs=pl.BlockSpec((C, tl), lambda j: (0, j)),
        compiler_params=_compiler_params(),
    )(x00, x01, x10, x11, wh, ww)
    return out.reshape(C, N, out_h, out_w)


# ----------------------------------------------------------------------------
# Layout / conv building blocks (channel-major: (C, N, H, W))
# ----------------------------------------------------------------------------
def _im2col3x3_T(xc):
    """Transposed im2col for a 3x3 / stride-1 / pad-1 conv on channel-major input.

    (C, N, H, W) -> (C*9, N*H*W); K index = c*9 + ki*3 + kj, matching
    weight.reshape(Cout, Cin*9)."""
    C, N, H, W = xc.shape
    # TODO(synk): patches are still materialized by XLA (9x read amplification)
    # instead of in-kernel shifted-matmul accumulation; fine at these channel
    # counts, revisit for large C*H*W.
    xp = jnp.pad(xc, ((0, 0), (0, 0), (1, 1), (1, 1)))
    cols = [xp[:, :, ki:ki + H, kj:kj + W] for ki in range(3) for kj in range(3)]
    return jnp.stack(cols, axis=1).reshape(C * 9, N * H * W)


def _upsample2x_cmajor(xc):
    """F.upsample(scale_factor=2, mode='nearest') on (C, N, h, w)."""
    return jnp.repeat(jnp.repeat(xc, 2, axis=2), 2, axis=3)


def _conv1x1_bn_relu(x_nchw, w, b, gamma, beta, mean, var, eps=1e-5):
    """Conv2d(1x1, bias) -> BatchNorm2d(eval) -> ReLU fused in one Pallas matmul.

    Returns the activation in channel-major layout (Cout, N, H, W)."""
    N, Cin, H, W = x_nchw.shape
    Cout = w.shape[0]
    xc = jnp.transpose(x_nchw, (1, 0, 2, 3)).reshape(Cin, N * H * W)
    wm = w.reshape(Cout, Cin)
    scale = gamma / jnp.sqrt(var + eps)
    shift = (beta - mean * scale) + b * scale     # conv bias folded into BN shift
    out = matmul_affine_T(wm, xc, shift, scale=scale, relu=True)
    return out.reshape(Cout, N, H, W)


# ----------------------------------------------------------------------------
# OctaveConv_v2 forward
# ----------------------------------------------------------------------------
def octave_conv_v2_forward(x, y, p, in_channels, out_channels,
                           alpha_in=0.5, alpha_out=0.5, stride=1):
    # Conv1x1 blocks -> channel-major activations.
    X_l = _conv1x1_bn_relu(y, p["c1_w"], p["c1_b"], p["c1_gamma"], p["c1_beta"],
                           p["c1_mean"], p["c1_var"])          # (in/2, N, hy, wy)
    X_h = _conv1x1_bn_relu(x, p["c2_w"], p["c2_b"], p["c2_gamma"], p["c2_beta"],
                           p["c2_mean"], p["c2_var"])          # (in/2, N, H, W)

    low_size = X_h.shape[2] // 2
    X_l = bilinear_resize_cmajor(X_l, low_size, low_size)

    if stride == 2:
        X_h = avgpool2x2_cmajor(X_h)
        X_l = avgpool2x2_cmajor(X_l)

    X_h_pool = avgpool2x2_cmajor(X_h)

    end_h_x = int(in_channels * (1 - alpha_in))
    end_h_y = int(out_channels * (1 - alpha_out))
    cin_h, cin_l = end_h_x, in_channels - end_h_x
    cout_h, cout_l = end_h_y, out_channels - end_h_y

    W_ = p["weights"]                                          # (out, in, 3, 3)
    bias = p["bias"]
    W_hh = W_[0:cout_h, 0:cin_h].reshape(cout_h, cin_h * 9)
    W_lh = W_[0:cout_h, cin_h:].reshape(cout_h, cin_l * 9)
    W_ll = W_[cout_h:, cin_h:].reshape(cout_l, cin_l * 9)
    W_hl = W_[cout_h:, 0:cin_h].reshape(cout_l, cin_h * 9)

    # Fused low-resolution conv (single matmul):
    #   rows [0:cout_h)  -> X_l2h               (X_l patches; pooled-h part zeroed)
    #   rows [cout_h: )  -> X_l2l + X_h2l       (K-concat fuses the residual add)
    patches_low = jnp.concatenate(
        [_im2col3x3_T(X_l), _im2col3x3_T(X_h_pool)], axis=0)   # (cin_l*9+cin_h*9, Ml)
    W_low = jnp.concatenate([
        jnp.concatenate([W_lh, jnp.zeros((cout_h, cin_h * 9), W_.dtype)], axis=1),
        jnp.concatenate([W_ll, W_hl], axis=1)], axis=0)        # (out, K_low)
    # Each of X_l2l and X_h2l adds bias[cout_h:] in the reference -> 2x here.
    shift_low = jnp.concatenate([bias[0:cout_h], 2.0 * bias[cout_h:]])
    low = matmul_affine_T(W_low, patches_low, shift_low,
                          relu=False)                          # (out, N*Hl*Wl)

    _, n_b, h_lo, w_lo = X_l.shape
    X_l2h = low[0:cout_h].reshape(cout_h, n_b, h_lo, w_lo)
    X_l_out = low[cout_h:].reshape(cout_l, n_b, h_lo, w_lo)    # X_l2l + X_h2l

    # High-resolution conv with the "+ upsample(X_l2h)" add fused as epilogue.
    _, _, h_hi, w_hi = X_h.shape
    X_l2h_up = _upsample2x_cmajor(X_l2h).reshape(cout_h, n_b * h_hi * w_hi)
    X_h_out = matmul_affine_T(W_hh, _im2col3x3_T(X_h), bias[0:cout_h],
                              relu=False, add=X_l2h_up)
    X_h_out = X_h_out.reshape(cout_h, n_b, h_hi, w_hi)

    # Assemble: concat high/low branches along channels, back to NCHW.
    X_l_out_up = _upsample2x_cmajor(X_l_out)
    out_cmajor = jnp.concatenate([X_h_out, X_l_out_up], axis=0)
    return jnp.transpose(out_cmajor, (1, 0, 2, 3))


# ----------------------------------------------------------------------------
# Parameter init + main
# ----------------------------------------------------------------------------
def init_params(key, in_channels, out_channels, kernel_size=(3, 3)):
    ks = jax.random.split(key, 6)
    half_in = in_channels // 2
    return {
        # self.weights / self.bias of OctaveConv_v2 (bias=False -> zeros).
        "weights": 0.1 * jax.random.normal(
            ks[0], (out_channels, in_channels, kernel_size[0], kernel_size[1]),
            jnp.float32),
        "bias": jnp.zeros((out_channels,), jnp.float32),
        # Conv1x1 = Conv1x1(512, in_channels // 2)
        "c1_w": 0.05 * jax.random.normal(ks[1], (half_in, 512, 1, 1), jnp.float32),
        "c1_b": 0.05 * jax.random.normal(ks[2], (half_in,), jnp.float32),
        "c1_gamma": jnp.ones((half_in,), jnp.float32),
        "c1_beta": jnp.zeros((half_in,), jnp.float32),
        "c1_mean": jnp.zeros((half_in,), jnp.float32),
        "c1_var": jnp.ones((half_in,), jnp.float32),
        # Conv1x1_ = Conv1x1(in_channels, in_channels // 2)
        "c2_w": 0.1 * jax.random.normal(ks[3], (half_in, in_channels, 1, 1), jnp.float32),
        "c2_b": 0.1 * jax.random.normal(ks[4], (half_in,), jnp.float32),
        "c2_gamma": jnp.ones((half_in,), jnp.float32),
        "c2_beta": jnp.zeros((half_in,), jnp.float32),
        "c2_mean": jnp.zeros((half_in,), jnp.float32),
        "c2_var": jnp.ones((half_in,), jnp.float32),
    }


if __name__ == "__main__":
    in_channels = 8
    out_channels = 8

    key = jax.random.PRNGKey(0)
    k_params, k_x, k_y = jax.random.split(key, 3)
    params = init_params(k_params, in_channels, out_channels)

    # x feeds Conv1x1_(in_channels, in/2); y feeds Conv1x1(512, in/2).
    x = jax.random.normal(k_x, (2, in_channels, 16, 16), jnp.float32)
    y = jax.random.normal(k_y, (2, 512, 4, 4), jnp.float32)

    fwd = jax.jit(functools.partial(octave_conv_v2_forward,
                                    in_channels=in_channels,
                                    out_channels=out_channels))
    out = jax.block_until_ready(fwd(x, y, params))

    assert out.shape == (2, out_channels, 16, 16), out.shape
    assert bool(jnp.all(jnp.isfinite(out)))
    print("KERNEL_OK")
</pallas_src>

<mosaic_0001>
module attributes {stable_mosaic.version = 11 : i64} {
  func.func @kernel(%arg0: i32, %arg1: memref<4x512xbf16, #tpu.memory_space<vmem>>, %arg2: memref<512x32xbf16, #tpu.memory_space<vmem>>, %arg3: memref<4x1xf32, #tpu.memory_space<vmem>>, %arg4: memref<4x1xf32, #tpu.memory_space<vmem>>, %arg5: memref<4x32xf32, #tpu.memory_space<vmem>>) attributes {dimension_semantics = [#tpu.dimension_semantics<parallel>], iteration_bounds = array<i64: 1>, scalar_prefetch = 0 : i64, scratch_operands = 0 : i64, tpu.core_type = #tpu.core_type<tc>, window_params = [{pipeline_mode = #tpu.pipeline_mode<synchronous>, transform_indices = @transform_0, window_bounds = array<i64: 4, 512>}, {transform_indices = @transform_1, window_bounds = array<i64: 512, 32>}, {pipeline_mode = #tpu.pipeline_mode<synchronous>, transform_indices = @transform_2, window_bounds = array<i64: 4, 1>}, {pipeline_mode = #tpu.pipeline_mode<synchronous>, transform_indices = @transform_3, window_bounds = array<i64: 4, 1>}, {transform_indices = @transform_4, window_bounds = array<i64: 4, 32>}]} {
    %c0 = arith.constant 0 : index
    %c0_0 = arith.constant 0 : index
    %0 = vector.load %arg1[%c0, %c0_0] : memref<4x512xbf16, #tpu.memory_space<vmem>>, vector<4x512xbf16>
    %c0_1 = arith.constant 0 : index
    %c0_2 = arith.constant 0 : index
    %1 = vector.load %arg2[%c0_1, %c0_2] : memref<512x32xbf16, #tpu.memory_space<vmem>>, vector<512x32xbf16>
    %cst = arith.constant dense<0.000000e+00> : vector<4x32xf32>
    %2 = tpu.matmul %0, %1, %cst {dimension_numbers = #tpu.dot_dimension_numbers<[1], [0], [0], [1], [0, 0, 1, 1], [], []>} : vector<4x512xbf16>, vector<512x32xbf16>, vector<4x32xf32> -> vector<4x32xf32>
    %c0_3 = arith.constant 0 : index
    %c0_4 = arith.constant 0 : index
    %3 = vector.load %arg3[%c0_3, %c0_4] : memref<4x1xf32, #tpu.memory_space<vmem>>, vector<4x1xf32>
    %4 = vector.broadcast %3 : vector<4x1xf32> to vector<4x32xf32>
    %5 = arith.mulf %2, %4 : vector<4x32xf32>
    %c0_5 = arith.constant 0 : index
    %c0_6 = arith.constant 0 : index
    %6 = vector.load %arg4[%c0_5, %c0_6] : memref<4x1xf32, #tpu.memory_space<vmem>>, vector<4x1xf32>
    %7 = vector.broadcast %6 : vector<4x1xf32> to vector<4x32xf32>
    %8 = arith.addf %5, %7 : vector<4x32xf32>
    %cst_7 = arith.constant 0.000000e+00 : f32
    %9 = vector.broadcast %cst_7 : f32 to vector<4x32xf32>
    %10 = arith.maximumf %8, %9 : vector<4x32xf32>
    %c0_8 = arith.constant 0 : index
    %c0_9 = arith.constant 0 : index
    %11 = vector.load %arg5[%c0_8, %c0_9] : memref<4x32xf32, #tpu.memory_space<vmem>>, vector<4x32xf32>
    tpu.vector_store %arg5[%c0_8, %c0_9], %10 {strides = array<i32>} : memref<4x32xf32, #tpu.memory_space<vmem>>, vector<4x32xf32>,
    return
  }
  func.func @transform_0(%arg0: i32) -> (i32, i32) {
    %c0_i32 = arith.constant 0 : i32
    %c0_i32_0 = arith.constant 0 : i32
    %c0_i32_1 = arith.constant 0 : i32
    return %c0_i32, %c0_i32_0 : i32, i32
  }
  func.func @transform_1(%arg0: i32) -> (i32, i32) {
    %c0_i32 = arith.constant 0 : i32
    %c0_i32_0 = arith.constant 0 : i32
    return %c0_i32, %arg0 : i32, i32
  }
  func.func @transform_2(%arg0: i32) -> (i32, i32) {
    %c0_i32 = arith.constant 0 : i32
    %c0_i32_0 = arith.constant 0 : i32
    %c0_i32_1 = arith.constant 0 : i32
    return %c0_i32, %c0_i32_0 : i32, i32
  }
  func.func @transform_3(%arg0: i32) -> (i32, i32) {
    %c0_i32 = arith.constant 0 : i32
    %c0_i32_0 = arith.constant 0 : i32
    %c0_i32_1 = arith.constant 0 : i32
    return %c0_i32, %c0_i32_0 : i32, i32
  }
  func.func @transform_4(%arg0: i32) -> (i32, i32) {
    %c0_i32 = arith.constant 0 : i32
    %c0_i32_0 = arith.constant 0 : i32
    return %c0_i32, %arg0 : i32, i32
  }
}

module attributes {stable_mosaic.version = 11 : i64} {
  func.func @_bilerp_kernel(%arg0: i32, %arg1: memref<4x128xf32, #tpu.memory_space<vmem>>, %arg2: memref<4x128xf32, #tpu.memory_space<vmem>>, %arg3: memref<4x128xf32, #tpu.memory_space<vmem>>, %arg4: memref<4x128xf32, #tpu.memory_space<vmem>>, %arg5: memref<1x128xf32, #tpu.memory_space<vmem>>, %arg6: memref<1x128xf32, #tpu.memory_space<vmem>>, %arg7: memref<4x128xf32, #tpu.memory_space<vmem>>) attributes {dimension_semantics = [#tpu.dimension_semantics<parallel>], iteration_bounds = array<i64: 1>, scalar_prefetch = 0 : i64, scratch_operands = 0 : i64, tpu.core_type = #tpu.core_type<tc>, window_params = [{transform_indices = @transform_0, window_bounds = array<i64: 4, 128>}, {transform_indices = @transform_1, window_bounds = array<i64: 4, 128>}, {transform_indices = @transform_2, window_bounds = array<i64: 4, 128>}, {transform_indices = @transform_3, window_bounds = array<i64: 4, 128>}, {transform_indices = @transform_4, window_bounds = array<i64: 1, 128>}, {transform_indices = @transform_5, window_bounds = array<i64: 1, 128>}, {transform_indices = @transform_6, window_bounds = array<i64: 4, 128>}]} {
    %c0 = arith.constant 0 : index
    %c0_0 = arith.constant 0 : index
    %0 = vector.load %arg6[%c0, %c0_0] : memref<1x128xf32, #tpu.memory_space<vmem>>, vector<1x128xf32>
    %c0_1 = arith.constant 0 : index
    %c0_2 = arith.constant 0 : index
    %1 = vector.load %arg5[%c0_1, %c0_2] : memref<1x128xf32, #tpu.memory_space<vmem>>, vector<1x128xf32>
    %c0_3 = arith.constant 0 : index
    %c0_4 = arith.constant 0 : index
    %2 = vector.load %arg1[%c0_3, %c0_4] : memref<4x128xf32, #tpu.memory_space<vmem>>, vector<4x128xf32>
    %c0_5 = arith.constant 0 : index
    %c0_6 = arith.constant 0 : index
    %3 = vector.load %arg2[%c0_5, %c0_6] : memref<4x128xf32, #tpu.memory_space<vmem>>, vector<4x128xf32>
    %c0_7 = arith.constant 0 : index
    %c0_8 = arith.constant 0 : index
    %4 = vector.load %arg1[%c0_7, %c0_8] : memref<4x128xf32, #tpu.memory_space<vmem>>, vector<4x128xf32>
    %5 = arith.subf %3, %4 : vector<4x128xf32>
    %6 = vector.broadcast %0 : vector<1x128xf32> to vector<4x128xf32>
    %7 = arith.mulf %5, %6 : vector<4x128xf32>
    %8 = arith.addf %2, %7 : vector<4x128xf32>
    %c0_9 = arith.constant 0 : index
    %c0_10 = arith.constant 0 : index
    %9 = vector.load %arg3[%c0_9, %c0_10] : memref<4x128xf32, #tpu.memory_space<vmem>>, vector<4x128xf32>
    %c0_11 = arith.constant 0 : index
    %c0_12 = arith.constant 0 : index
    %10 = vector.load %arg4[%c0_11, %c0_12] : memref<4x128xf32, #tpu.memory_space<vmem>>, vector<4x128xf32>
    %c0_13 = arith.constant 0 : index
    %c0_14 = arith.constant 0 : index
    %11 = vector.load %arg3[%c0_13, %c0_14] : memref<4x128xf32, #tpu.memory_space<vmem>>, vector<4x128xf32>
    %12 = arith.subf %10, %11 : vector<4x128xf32>
    %13 = vector.broadcast %0 : vector<1x128xf32> to vector<4x128xf32>
    %14 = arith.mulf %12, %13 : vector<4x128xf32>
    %15 = arith.addf %9, %14 : vector<4x128xf32>
    %16 = arith.subf %15, %8 : vector<4x128xf32>
    %17 = vector.broadcast %1 : vector<1x128xf32> to vector<4x128xf32>
    %18 = arith.mulf %16, %17 : vector<4x128xf32>
    %19 = arith.addf %8, %18 : vector<4x128xf32>
    %c0_15 = arith.constant 0 : index
    %c0_16 = arith.constant 0 : index
    %20 = vector.load %arg7[%c0_15, %c0_16] : memref<4x128xf32, #tpu.memory_space<vmem>>, vector<4x128xf32>
    tpu.vector_store %arg7[%c0_15, %c0_16], %19 {strides = array<i32>} : memref<4x128xf32, #tpu.memory_space<vmem>>, vector<4x128xf32>,
    return
  }
  func.func @transform_0(%arg0: i32) -> (i32, i32) {
    %c0_i32 = arith.constant 0 : i32
    %c0_i32_0 = arith.constant 0 : i32
    return %c0_i32, %arg0 : i32, i32
  }
  func.func @transform_1(%arg0: i32) -> (i32, i32) {
    %c0_i32 = arith.constant 0 : i32
    %c0_i32_0 = arith.constant 0 : i32
    return %c0_i32, %arg0 : i32, i32
  }
  func.func @transform_2(%arg0: i32) -> (i32, i32) {
    %c0_i32 = arith.constant 0 : i32
    %c0_i32_0 = arith.constant 0 : i32
    return %c0_i32, %arg0 : i32, i32
  }
  func.func @transform_3(%arg0: i32) -> (i32, i32) {
    %c0_i32 = arith.constant 0 : i32
    %c0_i32_0 = arith.constant 0 : i32
    return %c0_i32, %arg0 : i32, i32
  }
  func.func @transform_4(%arg0: i32) -> (i32, i32) {
    %c0_i32 = arith.constant 0 : i32
    %c0_i32_0 = arith.constant 0 : i32
    return %c0_i32, %arg0 : i32, i32
  }
  func.func @transform_5(%arg0: i32) -> (i32, i32) {
    %c0_i32 = arith.constant 0 : i32
    %c0_i32_0 = arith.constant 0 : i32
    return %c0_i32, %arg0 : i32, i32
  }
  func.func @transform_6(%arg0: i32) -> (i32, i32) {
    %c0_i32 = arith.constant 0 : i32
    %c0_i32_0 = arith.constant 0 : i32
    return %c0_i32, %arg0 : i32, i32
  }
}

module attributes {stable_mosaic.version = 11 : i64} {
  func.func @kernel(%arg0: i32, %arg1: memref<4x8xbf16, #tpu.memory_space<vmem>>, %arg2: memref<8x512xbf16, #tpu.memory_space<vmem>>, %arg3: memref<4x1xf32, #tpu.memory_space<vmem>>, %arg4: memref<4x1xf32, #tpu.memory_space<vmem>>, %arg5: memref<4x512xf32, #tpu.memory_space<vmem>>) attributes {dimension_semantics = [#tpu.dimension_semantics<parallel>], iteration_bounds = array<i64: 1>, scalar_prefetch = 0 : i64, scratch_operands = 0 : i64, tpu.core_type = #tpu.core_type<tc>, window_params = [{pipeline_mode = #tpu.pipeline_mode<synchronous>, transform_indices = @transform_0, window_bounds = array<i64: 4, 8>}, {transform_indices = @transform_1, window_bounds = array<i64: 8, 512>}, {pipeline_mode = #tpu.pipeline_mode<synchronous>, transform_indices = @transform_2, window_bounds = array<i64: 4, 1>}, {pipeline_mode = #tpu.pipeline_mode<synchronous>, transform_indices = @transform_3, window_bounds = array<i64: 4, 1>}, {transform_indices = @transform_4, window_bounds = array<i64: 4, 512>}]} {
    %c0 = arith.constant 0 : index
    %c0_0 = arith.constant 0 : index
    %0 = vector.load %arg1[%c0, %c0_0] : memref<4x8xbf16, #tpu.memory_space<vmem>>, vector<4x8xbf16>
    %c0_1 = arith.constant 0 : index
    %c0_2 = arith.constant 0 : index
    %1 = vector.load %arg2[%c0_1, %c0_2] : memref<8x512xbf16, #tpu.memory_space<vmem>>, vector<8x512xbf16>
    %cst = arith.constant dense<0.000000e+00> : vector<4x512xf32>
    %2 = tpu.matmul %0, %1, %cst {dimension_numbers = #tpu.dot_dimension_numbers<[1], [0], [0], [1], [0, 0, 1, 1], [], []>} : vector<4x8xbf16>, vector<8x512xbf16>, vector<4x512xf32> -> vector<4x512xf32>
    %c0_3 = arith.constant 0 : index
    %c0_4 = arith.constant 0 : index
    %3 = vector.load %arg3[%c0_3, %c0_4] : memref<4x1xf32, #tpu.memory_space<vmem>>, vector<4x1xf32>
    %4 = vector.broadcast %3 : vector<4x1xf32> to vector<4x512xf32>
    %5 = arith.mulf %2, %4 : vector<4x512xf32>
    %c0_5 = arith.constant 0 : index
    %c0_6 = arith.constant 0 : index
    %6 = vector.load %arg4[%c0_5, %c0_6] : memref<4x1xf32, #tpu.memory_space<vmem>>, vector<4x1xf32>
    %7 = vector.broadcast %6 : vector<4x1xf32> to vector<4x512xf32>
    %8 = arith.addf %5, %7 : vector<4x512xf32>
    %cst_7 = arith.constant 0.000000e+00 : f32
    %9 = vector.broadcast %cst_7 : f32 to vector<4x512xf32>
    %10 = arith.maximumf %8, %9 : vector<4x512xf32>
    %c0_8 = arith.constant 0 : index
    %c0_9 = arith.constant 0 : index
    %11 = vector.load %arg5[%c0_8, %c0_9] : memref<4x512xf32, #tpu.memory_space<vmem>>, vector<4x512xf32>
    tpu.vector_store %arg5[%c0_8, %c0_9], %10 {strides = array<i32>} : memref<4x512xf32, #tpu.memory_space<vmem>>, vector<4x512xf32>,
    return
  }
  func.func @transform_0(%arg0: i32) -> (i32, i32) {
    %c0_i32 = arith.constant 0 : i32
    %c0_i32_0 = arith.constant 0 : i32
    %c0_i32_1 = arith.constant 0 : i32
    return %c0_i32, %c0_i32_0 : i32, i32
  }
  func.func @transform_1(%arg0: i32) -> (i32, i32) {
    %c0_i32 = arith.constant 0 : i32
    %c0_i32_0 = arith.constant 0 : i32
    return %c0_i32, %arg0 : i32, i32
  }
  func.func @transform_2(%arg0: i32) -> (i32, i32) {
    %c0_i32 = arith.constant 0 : i32
    %c0_i32_0 = arith.constant 0 : i32
    %c0_i32_1 = arith.constant 0 : i32
    return %c0_i32, %c0_i32_0 : i32, i32
  }
  func.func @transform_3(%arg0: i32) -> (i32, i32) {
    %c0_i32 = arith.constant 0 : i32
    %c0_i32_0 = arith.constant 0 : i32
    %c0_i32_1 = arith.constant 0 : i32
    return %c0_i32, %c0_i32_0 : i32, i32
  }
  func.func @transform_4(%arg0: i32) -> (i32, i32) {
    %c0_i32 = arith.constant 0 : i32
    %c0_i32_0 = arith.constant 0 : i32
    return %c0_i32, %arg0 : i32, i32
  }
}

module attributes {stable_mosaic.version = 11 : i64} {
  func.func @_avg4_kernel(%arg0: i32, %arg1: memref<4x128xf32, #tpu.memory_space<vmem>>, %arg2: memref<4x128xf32, #tpu.memory_space<vmem>>, %arg3: memref<4x128xf32, #tpu.memory_space<vmem>>, %arg4: memref<4x128xf32, #tpu.memory_space<vmem>>, %arg5: memref<4x128xf32, #tpu.memory_space<vmem>>) attributes {dimension_semantics = [#tpu.dimension_semantics<parallel>], iteration_bounds = array<i64: 1>, scalar_prefetch = 0 : i64, scratch_operands = 0 : i64, tpu.core_type = #tpu.core_type<tc>, window_params = [{transform_indices = @transform_0, window_bounds = array<i64: 4, 128>}, {transform_indices = @transform_1, window_bounds = array<i64: 4, 128>}, {transform_indices = @transform_2, window_bounds = array<i64: 4, 128>}, {transform_indices = @transform_3, window_bounds = array<i64: 4, 128>}, {transform_indices = @transform_4, window_bounds = array<i64: 4, 128>}]} {
    %c0 = arith.constant 0 : index
    %c0_0 = arith.constant 0 : index
    %0 = vector.load %arg1[%c0, %c0_0] : memref<4x128xf32, #tpu.memory_space<vmem>>, vector<4x128xf32>
    %c0_1 = arith.constant 0 : index
    %c0_2 = arith.constant 0 : index
    %1 = vector.load %arg2[%c0_1, %c0_2] : memref<4x128xf32, #tpu.memory_space<vmem>>, vector<4x128xf32>
    %2 = arith.addf %0, %1 : vector<4x128xf32>
    %c0_3 = arith.constant 0 : index
    %c0_4 = arith.constant 0 : index
    %3 = vector.load %arg3[%c0_3, %c0_4] : memref<4x128xf32, #tpu.memory_space<vmem>>, vector<4x128xf32>
    %4 = arith.addf %2, %3 : vector<4x128xf32>
    %c0_5 = arith.constant 0 : index
    %c0_6 = arith.constant 0 : index
    %5 = vector.load %arg4[%c0_5, %c0_6] : memref<4x128xf32, #tpu.memory_space<vmem>>, vector<4x128xf32>
    %6 = arith.addf %4, %5 : vector<4x128xf32>
    %cst = arith.constant 2.500000e-01 : f32
    %7 = vector.broadcast %cst : f32 to vector<4x128xf32>
    %8 = arith.mulf %6, %7 : vector<4x128xf32>
    %c0_7 = arith.constant 0 : index
    %c0_8 = arith.constant 0 : index
    %9 = vector.load %arg5[%c0_7, %c0_8] : memref<4x128xf32, #tpu.memory_space<vmem>>, vector<4x128xf32>
    tpu.vector_store %arg5[%c0_7, %c0_8], %8 {strides = array<i32>} : memref<4x128xf32, #tpu.memory_space<vmem>>, vector<4x128xf32>,
    return
  }
  func.func @transform_0(%arg0: i32) -> (i32, i32) {
    %c0_i32 = arith.constant 0 : i32
    %c0_i32_0 = arith.constant 0 : i32
    return %c0_i32, %arg0 : i32, i32
  }
  func.func @transform_1(%arg0: i32) -> (i32, i32) {
    %c0_i32 = arith.constant 0 : i32
    %c0_i32_0 = arith.constant 0 : i32
    return %c0_i32, %arg0 : i32, i32
  }
  func.func @transform_2(%arg0: i32) -> (i32, i32) {
    %c0_i32 = arith.constant 0 : i32
    %c0_i32_0 = arith.constant 0 : i32
    return %c0_i32, %arg0 : i32, i32
  }
  func.func @transform_3(%arg0: i32) -> (i32, i32) {
    %c0_i32 = arith.constant 0 : i32
    %c0_i32_0 = arith.constant 0 : i32
    return %c0_i32, %arg0 : i32, i32
  }
  func.func @transform_4(%arg0: i32) -> (i32, i32) {
    %c0_i32 = arith.constant 0 : i32
    %c0_i32_0 = arith.constant 0 : i32
    return %c0_i32, %arg0 : i32, i32
  }
}

module attributes {stable_mosaic.version = 11 : i64} {
  func.func @kernel(%arg0: i32, %arg1: memref<8x72xbf16, #tpu.memory_space<vmem>>, %arg2: memref<72x128xbf16, #tpu.memory_space<vmem>>, %arg3: memref<8x1xf32, #tpu.memory_space<vmem>>, %arg4: memref<8x128xf32, #tpu.memory_space<vmem>>) attributes {dimension_semantics = [#tpu.dimension_semantics<parallel>], iteration_bounds = array<i64: 1>, scalar_prefetch = 0 : i64, scratch_operands = 0 : i64, tpu.core_type = #tpu.core_type<tc>, window_params = [{pipeline_mode = #tpu.pipeline_mode<synchronous>, transform_indices = @transform_0, window_bounds = array<i64: 8, 72>}, {transform_indices = @transform_1, window_bounds = array<i64: 72, 128>}, {pipeline_mode = #tpu.pipeline_mode<synchronous>, transform_indices = @transform_2, window_bounds = array<i64: 8, 1>}, {transform_indices = @transform_3, window_bounds = array<i64: 8, 128>}]} {
    %c0 = arith.constant 0 : index
    %c0_0 = arith.constant 0 : index
    %0 = vector.load %arg1[%c0, %c0_0] : memref<8x72xbf16, #tpu.memory_space<vmem>>, vector<8x72xbf16>
    %c0_1 = arith.constant 0 : index
    %c0_2 = arith.constant 0 : index
    %1 = vector.load %arg2[%c0_1, %c0_2] : memref<72x128xbf16, #tpu.memory_space<vmem>>, vector<72x128xbf16>
    %cst = arith.constant dense<0.000000e+00> : vector<8x128xf32>
    %2 = tpu.matmul %0, %1, %cst {dimension_numbers = #tpu.dot_dimension_numbers<[1], [0], [0], [1], [0, 0, 1, 1], [], []>} : vector<8x72xbf16>, vector<72x128xbf16>, vector<8x128xf32> -> vector<8x128xf32>
    %c0_3 = arith.constant 0 : index
    %c0_4 = arith.constant 0 : index
    %3 = vector.load %arg3[%c0_3, %c0_4] : memref<8x1xf32, #tpu.memory_space<vmem>>, vector<8x1xf32>
    %4 = vector.broadcast %3 : vector<8x1xf32> to vector<8x128xf32>
    %5 = arith.addf %2, %4 : vector<8x128xf32>
    %c0_5 = arith.constant 0 : index
    %c0_6 = arith.constant 0 : index
    %6 = vector.load %arg4[%c0_5, %c0_6] : memref<8x128xf32, #tpu.memory_space<vmem>>, vector<8x128xf32>
    tpu.vector_store %arg4[%c0_5, %c0_6], %5 {strides = array<i32>} : memref<8x128xf32, #tpu.memory_space<vmem>>, vector<8x128xf32>,
    return
  }
  func.func @transform_0(%arg0: i32) -> (i32, i32) {
    %c0_i32 = arith.constant 0 : i32
    %c0_i32_0 = arith.constant 0 : i32
    %c0_i32_1 = arith.constant 0 : i32
    return %c0_i32, %c0_i32_0 : i32, i32
  }
  func.func @transform_1(%arg0: i32) -> (i32, i32) {
    %c0_i32 = arith.constant 0 : i32
    %c0_i32_0 = arith.constant 0 : i32
    return %c0_i32, %arg0 : i32, i32
  }
  func.func @transform_2(%arg0: i32) -> (i32, i32) {
    %c0_i32 = arith.constant 0 : i32
    %c0_i32_0 = arith.constant 0 : i32
    %c0_i32_1 = arith.constant 0 : i32
    return %c0_i32, %c0_i32_0 : i32, i32
  }
  func.func @transform_3(%arg0: i32) -> (i32, i32) {
    %c0_i32 = arith.constant 0 : i32
    %c0_i32_0 = arith.constant 0 : i32
    return %c0_i32, %arg0 : i32, i32
  }
}

module attributes {stable_mosaic.version = 11 : i64} {
  func.func @kernel(%arg0: i32, %arg1: memref<4x36xbf16, #tpu.memory_space<vmem>>, %arg2: memref<36x512xbf16, #tpu.memory_space<vmem>>, %arg3: memref<4x1xf32, #tpu.memory_space<vmem>>, %arg4: memref<4x512xf32, #tpu.memory_space<vmem>>, %arg5: memref<4x512xf32, #tpu.memory_space<vmem>>) attributes {dimension_semantics = [#tpu.dimension_semantics<parallel>], iteration_bounds = array<i64: 1>, scalar_prefetch = 0 : i64, scratch_operands = 0 : i64, tpu.core_type = #tpu.core_type<tc>, window_params = [{pipeline_mode = #tpu.pipeline_mode<synchronous>, transform_indices = @transform_0, window_bounds = array<i64: 4, 36>}, {transform_indices = @transform_1, window_bounds = array<i64: 36, 512>}, {pipeline_mode = #tpu.pipeline_mode<synchronous>, transform_indices = @transform_2, window_bounds = array<i64: 4, 1>}, {transform_indices = @transform_3, window_bounds = array<i64: 4, 512>}, {transform_indices = @transform_4, window_bounds = array<i64: 4, 512>}]} {
    %c0 = arith.constant 0 : index
    %c0_0 = arith.constant 0 : index
    %0 = vector.load %arg1[%c0, %c0_0] : memref<4x36xbf16, #tpu.memory_space<vmem>>, vector<4x36xbf16>
    %c0_1 = arith.constant 0 : index
    %c0_2 = arith.constant 0 : index
    %1 = vector.load %arg2[%c0_1, %c0_2] : memref<36x512xbf16, #tpu.memory_space<vmem>>, vector<36x512xbf16>
    %cst = arith.constant dense<0.000000e+00> : vector<4x512xf32>
    %2 = tpu.matmul %0, %1, %cst {dimension_numbers = #tpu.dot_dimension_numbers<[1], [0], [0], [1], [0, 0, 1, 1], [], []>} : vector<4x36xbf16>, vector<36x512xbf16>, vector<4x512xf32> -> vector<4x512xf32>
    %c0_3 = arith.constant 0 : index
    %c0_4 = arith.constant 0 : index
    %3 = vector.load %arg3[%c0_3, %c0_4] : memref<4x1xf32, #tpu.memory_space<vmem>>, vector<4x1xf32>
    %4 = vector.broadcast %3 : vector<4x1xf32> to vector<4x512xf32>
    %5 = arith.addf %2, %4 : vector<4x512xf32>
    %c0_5 = arith.constant 0 : index
    %c0_6 = arith.constant 0 : index
    %6 = vector.load %arg4[%c0_5, %c0_6] : memref<4x512xf32, #tpu.memory_space<vmem>>, vector<4x512xf32>
    %7 = arith.addf %5, %6 : vector<4x512xf32>
    %c0_7 = arith.constant 0 : index
    %c0_8 = arith.constant 0 : index
    %8 = vector.load %arg5[%c0_7, %c0_8] : memref<4x512xf32, #tpu.memory_space<vmem>>, vector<4x512xf32>
    tpu.vector_store %arg5[%c0_7, %c0_8], %7 {strides = array<i32>} : memref<4x512xf32, #tpu.memory_space<vmem>>, vector<4x512xf32>,
    return
  }
  func.func @transform_0(%arg0: i32) -> (i32, i32) {
    %c0_i32 = arith.constant 0 : i32
    %c0_i32_0 = arith.constant 0 : i32
    %c0_i32_1 = arith.constant 0 : i32
    return %c0_i32, %c0_i32_0 : i32, i32
  }
  func.func @transform_1(%arg0: i32) -> (i32, i32) {
    %c0_i32 = arith.constant 0 : i32
    %c0_i32_0 = arith.constant 0 : i32
    return %c0_i32, %arg0 : i32, i32
  }
  func.func @transform_2(%arg0: i32) -> (i32, i32) {
    %c0_i32 = arith.constant 0 : i32
    %c0_i32_0 = arith.constant 0 : i32
    %c0_i32_1 = arith.constant 0 : i32
    return %c0_i32, %c0_i32_0 : i32, i32
  }
  func.func @transform_3(%arg0: i32) -> (i32, i32) {
    %c0_i32 = arith.constant 0 : i32
    %c0_i32_0 = arith.constant 0 : i32
    return %c0_i32, %arg0 : i32, i32
  }
  func.func @transform_4(%arg0: i32) -> (i32, i32) {
    %c0_i32 = arith.constant 0 : i32
    %c0_i32_0 = arith.constant 0 : i32
    return %c0_i32, %arg0 : i32, i32
  }
}

</mosaic_0001>

<llo_original>
// kernel: octave_conv_v2_forward.8
$region0: #{octave_conv_v2_forward.8}
  #allocation0 [shape = 'u32[]', space=smem, size = 0x4, offset = 0x4, fixed_abs, tag = 'smem constant byte address 0x4 - core index']
  #allocation1 [shape = 'u32[144,128]{1,0:T(1,128)}', space=vmem, size = 0x12000, scoped, tag = 'internal scratch']
  %s0 = inlined_call_operand.vmem [shape: f32[4,128], index: 0, kind: input, shape index: {}]
  %s1 = inlined_call_operand.vmem [shape: f32[4,128], index: 1, kind: input, shape index: {}]
  %s2 = inlined_call_operand.vmem [shape: f32[4,128], index: 2, kind: input, shape index: {}]
  %s3 = inlined_call_operand.vmem [shape: f32[4,128], index: 3, kind: input, shape index: {}]
  %s4 = inlined_call_operand.vmem [shape: f32[1,128], index: 4, kind: input, shape index: {}]
  %s5 = inlined_call_operand.vmem [shape: f32[1,128], index: 5, kind: input, shape index: {}]
  %s6 = inlined_call_operand.vmem [shape: f32[4,128], index: 6, kind: output, shape index: {}]
  %s7 = sld [smem:[#allocation0]]
  $region34: #{octave_conv_v2_forward.8} parent=0
    _
  %s9 = ssub.s32 1, %s7
  %s10 = scalar_select 0, %s9, %s7
  // Predicated region
  $region2: #{octave_conv_v2_forward.8} parent=0 // pred_check
    _
  $region3: #{octave_conv_v2_forward.8} parent=0 // pred_check_branch
    %12 = sbr.rel (0) target = $region5
  $region4: #{octave_conv_v2_forward.8} parent=0 // pred_region
    _
  $region5: #{octave_conv_v2_forward.8} parent=0 // pred_fallthru
    _
  // Predicated region
  $region6: #{octave_conv_v2_forward.8} parent=0 // pred_check
    _
  $region7: #{octave_conv_v2_forward.8} parent=0 // pred_check_branch
    %14 = sbr.rel (0) target = $region9
  $region8: #{octave_conv_v2_forward.8} parent=0 // pred_region
    _
  $region9: #{octave_conv_v2_forward.8} parent=0 // pred_fallthru
    _
  // Predicated region
  $region10: #{octave_conv_v2_forward.8} parent=0 // pred_check
    _
  $region11: #{octave_conv_v2_forward.8} parent=0 // pred_check_branch
    %16 = sbr.rel (0) target = $region13
  $region12: #{octave_conv_v2_forward.8} parent=0 // pred_region
    _
  $region13: #{octave_conv_v2_forward.8} parent=0 // pred_fallthru
    _
  // Predicated region
  $region14: #{octave_conv_v2_forward.8} parent=0 // pred_check
    _
  $region15: #{octave_conv_v2_forward.8} parent=0 // pred_check_branch
    %18 = sbr.rel (0) target = $region17
  $region16: #{octave_conv_v2_forward.8} parent=0 // pred_region
    _
  $region17: #{octave_conv_v2_forward.8} parent=0 // pred_fallthru
    _
  // Predicated region
  $region18: #{octave_conv_v2_forward.8} parent=0 // pred_check
    _
  $region19: #{octave_conv_v2_forward.8} parent=0 // pred_check_branch
    %20 = sbr.rel (0) target = $region21
  $region20: #{octave_conv_v2_forward.8} parent=0 // pred_region
    _
  $region21: #{octave_conv_v2_forward.8} parent=0 // pred_fallthru
    _
  // Predicated region
  $region22: #{octave_conv_v2_forward.8} parent=0 // pred_check
    _
  $region23: #{octave_conv_v2_forward.8} parent=0 // pred_check_branch
    %22 = sbr.rel (0) target = $region25
  $region24: #{octave_conv_v2_forward.8} parent=0 // pred_region
    _
  $region25: #{octave_conv_v2_forward.8} parent=0 // pred_fallthru
    _
  %v23 = vld [vmem:[%s5] sm:$0x1]
  %v24 = vld [vmem:[%s4] sm:$0x1]
  %v25 = vld [vmem:[%s0] sm:$0xf]
  %v26 = vld [vmem:[%s1] sm:$0xf]
  %v27 = vsub.f32 %v26, %v25
  %v29 = vlaneseq
  %v30 = vshrl.u32 %v29, 7
  %v31 = vsub.s32 0, %v30
  %v32 = vrot.slane %v23, %v31
  %v34 = vmul.f32 %v27, %v32
  %v35 = vadd.f32 %v25, %v34
  %v36 = vld [vmem:[%s2] sm:$0xf]
  %v37 = vld [vmem:[%s3] sm:$0xf]
  %v38 = vsub.f32 %v37, %v36
  %v39 = vmul.f32 %v38, %v32
  %v40 = vadd.f32 %v36, %v39
  %v41 = vsub.f32 %v40, %v35
  %v43 = vlaneseq
  %v44 = vshrl.u32 %v43, 7
  %v45 = vsub.s32 0, %v44
  %v46 = vrot.slane %v24, %v45
  %v48 = vmul.f32 %v41, %v46
  %v49 = vadd.f32 %v35, %v48
  %50 = vst [vmem:[%s6] sm:$0xf] %v49
  // Predicated region
  $region26: #{octave_conv_v2_forward.8} parent=0 // pred_check
    _
  $region27: #{octave_conv_v2_forward.8} parent=0 // pred_check_branch
    %52 = sbr.rel (0) target = $region29
  $region28: #{octave_conv_v2_forward.8} parent=0 // pred_region
    _
  $region29: #{octave_conv_v2_forward.8} parent=0 // pred_fallthru
    _
  // Predicated region
  $region30: #{octave_conv_v2_forward.8} parent=0 // pred_check
    _
  $region31: #{octave_conv_v2_forward.8} parent=0 // pred_check_branch
    %54 = sbr.rel (0) target = $region33
  $region32: #{octave_conv_v2_forward.8} parent=0 // pred_region
    _
  $region33: #{octave_conv_v2_forward.8} parent=0 // pred_fallthru
    _

// kernel: octave_conv_v2_forward.6
$region0: #{octave_conv_v2_forward.6}
  #allocation0 [shape = 'u32[]', space=smem, size = 0x4, offset = 0x4, fixed_abs, tag = 'smem constant byte address 0x4 - core index']
  #allocation1 [shape = 'u32[144,128]{1,0:T(1,128)}', space=vmem, size = 0x12000, scoped, tag = 'internal scratch']
  %s0 = inlined_call_operand.vmem [shape: bf16[4,512], index: 0, kind: input, shape index: {}]
  %s1 = inlined_call_operand.vmem [shape: bf16[512,32], index: 1, kind: input, shape index: {}]
  %s2 = inlined_call_operand.vmem [shape: f32[4,1], index: 2, kind: input, shape index: {}]
  %s3 = inlined_call_operand.vmem [shape: f32[4,1], index: 3, kind: input, shape index: {}]
  %s4 = inlined_call_operand.vmem [shape: f32[4,32], index: 4, kind: output, shape index: {}]
  %s5 = sld [smem:[#allocation0]]
  $region26: #{octave_conv_v2_forward.6} parent=0
    _
  %s7 = ssub.s32 1, %s5
  %s8 = scalar_select 0, %s7, %s5
  // Predicated region
  $region2: #{octave_conv_v2_forward.6} parent=0 // pred_check
    _
  $region3: #{octave_conv_v2_forward.6} parent=0 // pred_check_branch
    %10 = sbr.rel (0) target = $region5
  $region4: #{octave_conv_v2_forward.6} parent=0 // pred_region
    _
  $region5: #{octave_conv_v2_forward.6} parent=0 // pred_fallthru
    _
  // Predicated region
  $region6: #{octave_conv_v2_forward.6} parent=0 // pred_check
    _
  $region7: #{octave_conv_v2_forward.6} parent=0 // pred_check_branch
    %12 = sbr.rel (0) target = $region9
  $region8: #{octave_conv_v2_forward.6} parent=0 // pred_region
    _
  $region9: #{octave_conv_v2_forward.6} parent=0 // pred_fallthru
    _
  // Predicated region
  $region10: #{octave_conv_v2_forward.6} parent=0 // pred_check
    _
  $region11: #{octave_conv_v2_forward.6} parent=0 // pred_check_branch
    %14 = sbr.rel (0) target = $region13
  $region12: #{octave_conv_v2_forward.6} parent=0 // pred_region
    _
  $region13: #{octave_conv_v2_forward.6} parent=0 // pred_fallthru
    _
  // Predicated region
  $region14: #{octave_conv_v2_forward.6} parent=0 // pred_check
    _
  $region15: #{octave_conv_v2_forward.6} parent=0 // pred_check_branch
    %16 = sbr.rel (0) target = $region17
  $region16: #{octave_conv_v2_forward.6} parent=0 // pred_region
    _
  $region17: #{octave_conv_v2_forward.6} parent=0 // pred_fallthru
    _
  %v18 = vld [vmem:[%s0] sm:$0xff]
  %v19 = vld [vmem:[%s1] sm:$0xf]
  %v20 = vld [vmem:[%s1 + $0x4] sm:$0xf]
  %v21 = vld [vmem:[%s1 + $0x8] sm:$0xf]
  %v22 = vld [vmem:[%s1 + $0xc] sm:$0xf]
  %v23 = vld [vmem:[%s1 + $0x10] sm:$0xf]
  %v24 = vld [vmem:[%s1 + $0x14] sm:$0xf]
  %v25 = vld [vmem:[%s1 + $0x18] sm:$0xf]
  %v26 = vld [vmem:[%s1 + $0x1c] sm:$0xf]
  %v27 = vld [vmem:[%s1 + $0x20] sm:$0xf]
  %v28 = vld [vmem:[%s1 + $0x24] sm:$0xf]
  %v29 = vld [vmem:[%s1 + $0x28] sm:$0xf]
  %v30 = vld [vmem:[%s1 + $0x2c] sm:$0xf]
  %v31 = vld [vmem:[%s1 + $0x30] sm:$0xf]
  %v32 = vld [vmem:[%s1 + $0x34] sm:$0xf]
  %v33 = vld [vmem:[%s1 + $0x38] sm:$0xf]
  %v34 = vld [vmem:[%s1 + $0x3c] sm:$0xf]
  %v35 = vld [vmem:[%s1 + $0x40] sm:$0xf]
  %v36 = vld [vmem:[%s1 + $0x44] sm:$0xf]
  %v37 = vld [vmem:[%s1 + $0x48] sm:$0xf]
  %v38 = vld [vmem:[%s1 + $0x4c] sm:$0xf]
  %v39 = vld [vmem:[%s1 + $0x50] sm:$0xf]
  %v40 = vld [vmem:[%s1 + $0x54] sm:$0xf]
  %v41 = vld [vmem:[%s1 + $0x58] sm:$0xf]
  %v42 = vld [vmem:[%s1 + $0x5c] sm:$0xf]
  %v43 = vld [vmem:[%s1 + $0x60] sm:$0xf]
  %v44 = vld [vmem:[%s1 + $0x64] sm:$0xf]
  %v45 = vld [vmem:[%s1 + $0x68] sm:$0xf]
  %v46 = vld [vmem:[%s1 + $0x6c] sm:$0xf]
  %v47 = vld [vmem:[%s1 + $0x70] sm:$0xf]
  %v48 = vld [vmem:[%s1 + $0x74] sm:$0xf]
  %v49 = vld [vmem:[%s1 + $0x78] sm:$0xf]
  %v50 = vld [vmem:[%s1 + $0x7c] sm:$0xf]
  %v51 = vld [vmem:[%s1 + $0x80] sm:$0xf]
  %v52 = vld [vmem:[%s1 + $0x84] sm:$0xf]
  %v53 = vld [vmem:[%s1 + $0x88] sm:$0xf]
  %v54 = vld [vmem:[%s1 + $0x8c] sm:$0xf]
  %v55 = vld [vmem:[%s1 + $0x90] sm:$0xf]
  %v56 = vld [vmem:[%s1 + $0x94] sm:$0xf]
  %v57 = vld [vmem:[%s1 + $0x98] sm:$0xf]
  %v58 = vld [vmem:[%s1 + $0x9c] sm:$0xf]
  %v59 = vld [vmem:[%s1 + $0xa0] sm:$0xf]
  %v60 = vld [vmem:[%s1 + $0xa4] sm:$0xf]
  %v61 = vld [vmem:[%s1 + $0xa8] sm:$0xf]
  %v62 = vld [vmem:[%s1 + $0xac] sm:$0xf]
  %v63 = vld [vmem:[%s1 + $0xb0] sm:$0xf]
  %v64 = vld [vmem:[%s1 + $0xb4] sm:$0xf]
  %v65 = vld [vmem:[%s1 + $0xb8] sm:$0xf]
  %v66 = vld [vmem:[%s1 + $0xbc] sm:$0xf]
  %v67 = vld [vmem:[%s1 + $0xc0] sm:$0xf]
  %v68 = vld [vmem:[%s1 + $0xc4] sm:$0xf]
  %v69 = vld [vmem:[%s1 + $0xc8] sm:$0xf]
  %v70 = vld [vmem:[%s1 + $0xcc] sm:$0xf]
  %v71 = vld [vmem:[%s1 + $0xd0] sm:$0xf]
  %v72 = vld [vmem:[%s1 + $0xd4] sm:$0xf]
  %v73 = vld [vmem:[%s1 + $0xd8] sm:$0xf]
  %v74 = vld [vmem:[%s1 + $0xdc] sm:$0xf]
  %v75 = vld [vmem:[%s1 + $0xe0] sm:$0xf]
  %v76 = vld [vmem:[%s1 + $0xe4] sm:$0xf]
  %v77 = vld [vmem:[%s1 + $0xe8] sm:$0xf]
  %v78 = vld [vmem:[%s1 + $0xec] sm:$0xf]
  %v79 = vld [vmem:[%s1 + $0xf0] sm:$0xf]
  %v80 = vld [vmem:[%s1 + $0xf4] sm:$0xf]
  %v81 = vld [vmem:[%s1 + $0xf8] sm:$0xf]
  %v82 = vld [vmem:[%s1 + $0xfc] sm:$0xf]
  %v84 = vcombine.high %v18, %v18
  %v86 = vunpack.c.l.s4 1983009808
  %v87 = vunpack.c.0.s8 %v86
  %v88 = vlaneseq
  %v89 = vshrl.u32 %v88, 7
  %v90 = vsub.s32 %v87, %v89
  %v91 = vrot.slane %v18, %v90
  %v93 = vunpack.c.l.s4 1983009808
  %v94 = vunpack.c.0.s8 %v93
  %v95 = vlaneseq
  %v96 = vshrl.u32 %v95, 7
  %v97 = vsub.s32 %v94, %v96
  %v98 = vrot.slane %v84, %v97
  %v99 = vcombine.high %v91, %v91
  %v100 = vcombine.high %v98, %v98
  %v169 = vunpack.c.l.b16 %v19
  %v170 = vunpack.c.l.b16 %v20
  %v171 = vunpack.c.l.b16 %v21
  %v172 = vunpack.c.l.b16 %v22
  %v173 = vunpack.c.l.b16 %v23
  %v174 = vunpack.c.l.b16 %v24
  %v175 = vunpack.c.l.b16 %v25
  %v176 = vunpack.c.l.b16 %v26
  %v177 = vunpack.c.l.b16 %v27
  %v178 = vunpack.c.l.b16 %v28
  %v179 = vunpack.c.l.b16 %v29
  %v180 = vunpack.c.l.b16 %v30
  %v181 = vunpack.c.l.b16 %v31
  %v182 = vunpack.c.l.b16 %v32
  %v183 = vunpack.c.l.b16 %v33
  %v184 = vunpack.c.l.b16 %v34
  %v185 = vunpack.c.l.b16 %v35
  %v186 = vunpack.c.l.b16 %v36
  %v187 = vunpack.c.l.b16 %v37
  %v188 = vunpack.c.l.b16 %v38
  %v189 = vunpack.c.l.b16 %v39
  %v190 = vunpack.c.l.b16 %v40
  %v191 = vunpack.c.l.b16 %v41
  %v192 = vunpack.c.l.b16 %v42
  %v193 = vunpack.c.l.b16 %v43
  %v194 = vunpack.c.l.b16 %v44
  %v195 = vunpack.c.l.b16 %v45
  %v196 = vunpack.c.l.b16 %v46
  %v197 = vunpack.c.l.b16 %v47
  %v198 = vunpack.c.l.b16 %v48
  %v199 = vunpack.c.l.b16 %v49
  %v200 = vunpack.c.l.b16 %v50
  %v201 = vunpack.c.l.b16 %v51
  %v202 = vunpack.c.l.b16 %v52
  %v203 = vunpack.c.l.b16 %v53
  %v204 = vunpack.c.l.b16 %v54
  %v205 = vunpack.c.l.b16 %v55
  %v206 = vunpack.c.l.b16 %v56
  %v207 = vunpack.c.l.b16 %v57
  %v208 = vunpack.c.l.b16 %v58
  %v209 = vunpack.c.l.b16 %v59
  %v210 = vunpack.c.l.b16 %v60
  %v211 = vunpack.c.l.b16 %v61
  %v212 = vunpack.c.l.b16 %v62
  %v213 = vunpack.c.l.b16 %v63
  %v214 = vunpack.c.l.b16 %v64
  %v215 = vunpack.c.l.b16 %v65
  %v216 = vunpack.c.l.b16 %v66
  %v217 = vunpack.c.l.b16 %v67
  %v218 = vunpack.c.l.b16 %v68
  %v219 = vunpack.c.l.b16 %v69
  %v220 = vunpack.c.l.b16 %v70
  %v221 = vunpack.c.l.b16 %v71
  %v222 = vunpack.c.l.b16 %v72
  %v223 = vunpack.c.l.b16 %v73
  %v224 = vunpack.c.l.b16 %v74
  %v225 = vunpack.c.l.b16 %v75
  %v226 = vunpack.c.l.b16 %v76
  %v227 = vunpack.c.l.b16 %v77
  %v228 = vunpack.c.l.b16 %v78
  %v229 = vunpack.c.l.b16 %v79
  %v230 = vunpack.c.l.b16 %v80
  %v231 = vunpack.c.l.b16 %v81
  %v232 = vunpack.c.l.b16 %v82
  %v233 = vpack.c.b16 %v170, %v169
  %v234 = vpack.c.b16 %v172, %v171
  %v235 = vpack.c.b16 %v174, %v173
  %v236 = vpack.c.b16 %v176, %v175
  %v237 = vpack.c.b16 %v178, %v177
  %v238 = vpack.c.b16 %v180, %v179
  %v239 = vpack.c.b16 %v182, %v181
  %v240 = vpack.c.b16 %v184, %v183
  %v241 = vpack.c.b16 %v186, %v185
  %v242 = vpack.c.b16 %v188, %v187
  %v243 = vpack.c.b16 %v190, %v189
  %v244 = vpack.c.b16 %v192, %v191
  %v245 = vpack.c.b16 %v194, %v193
  %v246 = vpack.c.b16 %v196, %v195
  %v247 = vpack.c.b16 %v198, %v197
  %v248 = vpack.c.b16 %v200, %v199
  %v249 = vpack.c.b16 %v202, %v201
  %v250 = vpack.c.b16 %v204, %v203
  %v251 = vpack.c.b16 %v206, %v205
  %v252 = vpack.c.b16 %v208, %v207
  %v253 = vpack.c.b16 %v210, %v209
  %v254 = vpack.c.b16 %v212, %v211
  %v255 = vpack.c.b16 %v214, %v213
  %v256 = vpack.c.b16 %v216, %v215
  %v257 = vpack.c.b16 %v218, %v217
  %v258 = vpack.c.b16 %v220, %v219
  %v259 = vpack.c.b16 %v222, %v221
  %v260 = vpack.c.b16 %v224, %v223
  %v261 = vpack.c.b16 %v226, %v225
  %v262 = vpack.c.b16 %v228, %v227
  %v263 = vpack.c.b16 %v230, %v229
  %v264 = vpack.c.b16 %v232, %v231
  %297 = vmatprep.subr.bf16.mxu0 0
  %298 = vmatpush1.bf16.msra.mxu0 %v233
  %299 = vmatprep.subr.bf16.mxu0 0
  %300 = vmatpush1.bf16.msra.mxu0 %v234
  %301 = vmatprep.subr.bf16.mxu0 0
  %302 = vmatpush1.bf16.msra.mxu0 %v235
  %303 = vmatprep.subr.bf16.mxu0 0
  %304 = vmatpush1.bf16.msra.mxu0 %v236
  %305 = vmatprep.subr.bf16.mxu0 0
  %306 = vmatpush1.bf16.msra.mxu0 %v237
  %307 = vmatprep.subr.bf16.mxu0 0
  %308 = vmatpush1.bf16.msra.mxu0 %v238
  %309 = vmatprep.subr.bf16.mxu0 0
  %310 = vmatpush1.bf16.msra.mxu0 %v239
  %311 = vmatprep.subr.bf16.mxu0 0
  %312 = vmatpush1.bf16.msra.mxu0 %v240
  %313 = vmatprep.subr.bf16.mxu0 0
  %314 = vmatpush1.bf16.msra.mxu0 %v241
  %315 = vmatprep.subr.bf16.mxu0 0
  %316 = vmatpush1.bf16.msra.mxu0 %v242
  %317 = vmatprep.subr.bf16.mxu0 0
  %318 = vmatpush1.bf16.msra.mxu0 %v243
  %319 = vmatprep.subr.bf16.mxu0 0
  %320 = vmatpush1.bf16.msra.mxu0 %v244
  %321 = vmatprep.subr.bf16.mxu0 0
  %322 = vmatpush1.bf16.msra.mxu0 %v245
  %323 = vmatprep.subr.bf16.mxu0 0
  %324 = vmatpush1.bf16.msra.mxu0 %v246
  %325 = vmatprep.subr.bf16.mxu0 0
  %326 = vmatpush1.bf16.msra.mxu0 %v247
  %327 = vmatprep.subr.bf16.mxu0 0
  %328 = vmatpush1.bf16.msra.mxu0 %v248
  %329 = vmatprep.mubr.bf16.mxu0 %v99
  %330 = vmatmul.mubr.bf16.gmra.mrb[0].mxu0 %v91
  %v331 = vpop.f32.mrb[0].mxu0
  %v332 = vadd.f32 0.0, %v331
  %v333 = vpop.f32.mrb[0].mxu0
  %v334 = vpop.f32.mrb[0].mxu0
  %v335 = vpop.f32.mrb[0].mxu0
  %336 = vdwg.mxu0
  %337 = vmatprep.subr.bf16.mxu0 0
  %338 = vmatpush1.bf16.msra.mxu0 %v249
  %339 = vmatprep.subr.bf16.mxu0 0
  %340 = vmatpush1.bf16.msra.mxu0 %v250
  %341 = vmatprep.subr.bf16.mxu0 0
  %342 = vmatpush1.bf16.msra.mxu0 %v251
  %343 = vmatprep.subr.bf16.mxu0 0
  %344 = vmatpush1.bf16.msra.mxu0 %v252
  %345 = vmatprep.subr.bf16.mxu0 0
  %346 = vmatpush1.bf16.msra.mxu0 %v253
  %347 = vmatprep.subr.bf16.mxu0 0
  %348 = vmatpush1.bf16.msra.mxu0 %v254
  %349 = vmatprep.subr.bf16.mxu0 0
  %350 = vmatpush1.bf16.msra.mxu0 %v255
  %351 = vmatprep.subr.bf16.mxu0 0
  %352 = vmatpush1.bf16.msra.mxu0 %v256
  %353 = vmatprep.subr.bf16.mxu0 0
  %354 = vmatpush1.bf16.msra.mxu0 %v257
  %355 = vmatprep.subr.bf16.mxu0 0
  %356 = vmatpush1.bf16.msra.mxu0 %v258
  %357 = vmatprep.subr.bf16.mxu0 0
  %358 = vmatpush1.bf16.msra.mxu0 %v259
  %359 = vmatprep.subr.bf16.mxu0 0
  %360 = vmatpush1.bf16.msra.mxu0 %v260
  %361 = vmatprep.subr.bf16.mxu0 0
  %362 = vmatpush1.bf16.msra.mxu0 %v261
  %363 = vmatprep.subr.bf16.mxu0 0
  %364 = vmatpush1.bf16.msra.mxu0 %v262
  %365 = vmatprep.subr.bf16.mxu0 0
  %366 = vmatpush1.bf16.msra.mxu0 %v263
  %367 = vmatprep.subr.bf16.mxu0 0
  %368 = vmatpush1.bf16.msra.mxu0 %v264
  %369 = vmatprep.mubr.bf16.mxu0 %v100
  %370 = vmatmul.mubr.bf16.gmra.mrb[0].mxu0 %v98
  %v371 = vpop.f32.mrb[0].mxu0
  %v372 = vadd.f32 %v332, %v371
  %v373 = vpop.f32.mrb[0].mxu0
  %v374 = vpop.f32.mrb[0].mxu0
  %v375 = vpop.f32.mrb[0].mxu0
  %376 = vdwg.mxu0
  %v377 = vld [vmem:[%s2] sm:$0xf]
  %379 = vset.pattern.permute.xlu0 0
  %380 = vperm.xlu0 %379, %v377
  %v381 = vpop.permute.xlu0 %380
  %v383 = vmul.f32 %v372, %v381
  %v384 = vld [vmem:[%s3] sm:$0xf]
  %386 = vset.pattern.permute.xlu0 0
  %387 = vperm.xlu0 %386, %v384
  %v388 = vpop.permute.xlu0 %387
  %v390 = vadd.f32 %v383, %v388
  %v391 = vmax.f32 %v390, 0.0
  %vm392 = vcmask 257024
  %393 = vst.msk [vmem:[%s4] sm:$0xf] %vm392, %v391
  // Predicated region
  $region18: #{octave_conv_v2_forward.6} parent=0 // pred_check
    _
  $region19: #{octave_conv_v2_forward.6} parent=0 // pred_check_branch
    %395 = sbr.rel (0) target = $region21
  $region20: #{octave_conv_v2_forward.6} parent=0 // pred_region
    _
  $region21: #{octave_conv_v2_forward.6} parent=0 // pred_fallthru
    _
  // Predicated region
  $region22: #{octave_conv_v2_forward.6} parent=0 // pred_check
    _
  $region23: #{octave_conv_v2_forward.6} parent=0 // pred_check_branch
    %397 = sbr.rel (0) target = $region25
  $region24: #{octave_conv_v2_forward.6} parent=0 // pred_region
    _
  $region25: #{octave_conv_v2_forward.6} parent=0 // pred_fallthru
    _

// kernel: octave_conv_v2_forward.7
$region0: #{octave_conv_v2_forward.7}
  #allocation0 [shape = 'u32[]', space=smem, size = 0x4, offset = 0x4, fixed_abs, tag = 'smem constant byte address 0x4 - core index']
  #allocation1 [shape = 'u32[144,128]{1,0:T(1,128)}', space=vmem, size = 0x12000, scoped, tag = 'internal scratch']
  %s0 = inlined_call_operand.vmem [shape: bf16[4,8], index: 0, kind: input, shape index: {}]
  %s1 = inlined_call_operand.vmem [shape: bf16[8,512], index: 1, kind: input, shape index: {}]
  %s2 = inlined_call_operand.vmem [shape: f32[4,1], index: 2, kind: input, shape index: {}]
  %s3 = inlined_call_operand.vmem [shape: f32[4,1], index: 3, kind: input, shape index: {}]
  %s4 = inlined_call_operand.vmem [shape: f32[4,512], index: 4, kind: output, shape index: {}]
  %s5 = sld [smem:[#allocation0]]
  $region26: #{octave_conv_v2_forward.7} parent=0
    _
  %s7 = ssub.s32 1, %s5
  %s8 = scalar_select 0, %s7, %s5
  // Predicated region
  $region2: #{octave_conv_v2_forward.7} parent=0 // pred_check
    _
  $region3: #{octave_conv_v2_forward.7} parent=0 // pred_check_branch
    %10 = sbr.rel (0) target = $region5
  $region4: #{octave_conv_v2_forward.7} parent=0 // pred_region
    _
  $region5: #{octave_conv_v2_forward.7} parent=0 // pred_fallthru
    _
  // Predicated region
  $region6: #{octave_conv_v2_forward.7} parent=0 // pred_check
    _
  $region7: #{octave_conv_v2_forward.7} parent=0 // pred_check_branch
    %12 = sbr.rel (0) target = $region9
  $region8: #{octave_conv_v2_forward.7} parent=0 // pred_region
    _
  $region9: #{octave_conv_v2_forward.7} parent=0 // pred_fallthru
    _
  // Predicated region
  $region10: #{octave_conv_v2_forward.7} parent=0 // pred_check
    _
  $region11: #{octave_conv_v2_forward.7} parent=0 // pred_check_branch
    %14 = sbr.rel (0) target = $region13
  $region12: #{octave_conv_v2_forward.7} parent=0 // pred_region
    _
  $region13: #{octave_conv_v2_forward.7} parent=0 // pred_fallthru
    _
  // Predicated region
  $region14: #{octave_conv_v2_forward.7} parent=0 // pred_check
    _
  $region15: #{octave_conv_v2_forward.7} parent=0 // pred_check_branch
    %16 = sbr.rel (0) target = $region17
  $region16: #{octave_conv_v2_forward.7} parent=0 // pred_region
    _
  $region17: #{octave_conv_v2_forward.7} parent=0 // pred_fallthru
    _
  %v18 = vld [vmem:[%s0] sm:$0x3]
  %v19 = vld [vmem:[%s1] sm:$0xff]
  %v20 = vld [vmem:[%s1 + $0x8] sm:$0xff]
  %v23 = vunpack.c.l.b16 %v19
  %v24 = vunpack.c.h.b16 %v19
  %v25 = vunpack.c.l.b16 %v20
  %v26 = vunpack.c.h.b16 %v20
  %v27 = vpack.c.b16 %v23, %v23
  %v28 = vpack.c.b16 %v24, %v24
  %v29 = vpack.c.b16 %v25, %v25
  %v30 = vpack.c.b16 %v26, %v26
  %vm31 = vcmask 64512
  %v33 = vsel %vm31, %v18, 0
  %vm35 = vcmask 1043456
  %v37 = vsel %vm35, %v27, 0
  %v40 = vsel %vm35, %v28, 0
  %v43 = vsel %vm35, %v29, 0
  %v46 = vsel %vm35, %v30, 0
  %48 = vmatprep.subr.bf16.mxu0 %v40
  %49 = vmatpush1.bf16.msra.mxu0 %v37
  %50 = vmatprep.subr.bf16.mxu0 0
  %51 = vmatpush1.bf16.msra.mxu0 0
  %52 = vmatprep.subr.bf16.mxu0 0
  %53 = vmatpush1.bf16.msra.mxu0 0
  %54 = vmatprep.subr.bf16.mxu0 0
  %55 = vmatpush1.bf16.msra.mxu0 0
  %56 = vmatprep.subr.bf16.mxu0 0
  %57 = vmatpush1.bf16.msra.mxu0 0
  %58 = vmatprep.subr.bf16.mxu0 0
  %59 = vmatpush1.bf16.msra.mxu0 0
  %60 = vmatprep.subr.bf16.mxu0 0
  %61 = vmatpush1.bf16.msra.mxu0 0
  %62 = vmatprep.subr.bf16.mxu0 0
  %63 = vmatpush1.bf16.msra.mxu0 0
  %64 = vmatprep.subr.bf16.mxu0 0
  %65 = vmatpush1.bf16.msra.mxu0 0
  %66 = vmatprep.subr.bf16.mxu0 0
  %67 = vmatpush1.bf16.msra.mxu0 0
  %68 = vmatprep.subr.bf16.mxu0 0
  %69 = vmatpush1.bf16.msra.mxu0 0
  %70 = vmatprep.subr.bf16.mxu0 0
  %71 = vmatpush1.bf16.msra.mxu0 0
  %72 = vmatprep.subr.bf16.mxu0 0
  %73 = vmatpush1.bf16.msra.mxu0 0
  %74 = vmatprep.subr.bf16.mxu0 0
  %75 = vmatpush1.bf16.msra.mxu0 0
  %76 = vmatprep.subr.bf16.mxu0 0
  %77 = vmatpush1.bf16.msra.mxu0 0
  %78 = vmatprep.subr.bf16.mxu0 0
  %79 = vmatpush1.bf16.msra.mxu0 0
  %80 = vmatprep.mubr.bf16.mxu0 0
  %81 = vmatmul.mubr.bf16.gmra.mrb[0].mxu0 %v33
  %v82 = vpop.f32.mrb[0].mxu0
  %v83 = vadd.f32 0.0, %v82
  %v84 = vpop.f32.mrb[0].mxu0
  %v85 = vadd.f32 0.0, %v84
  %v86 = vpop.f32.mrb[0].mxu0
  %v87 = vpop.f32.mrb[0].mxu0
  %88 = vdwg.mxu0
  %89 = vmatprep.subr.bf16.mxu0 %v46
  %90 = vmatpush1.bf16.msra.mxu0 %v43
  %91 = vmatprep.subr.bf16.mxu0 0
  %92 = vmatpush1.bf16.msra.mxu0 0
  %93 = vmatprep.subr.bf16.mxu0 0
  %94 = vmatpush1.bf16.msra.mxu0 0
  %95 = vmatprep.subr.bf16.mxu0 0
  %96 = vmatpush1.bf16.msra.mxu0 0
  %97 = vmatprep.subr.bf16.mxu0 0
  %98 = vmatpush1.bf16.msra.mxu0 0
  %99 = vmatprep.subr.bf16.mxu0 0
  %100 = vmatpush1.bf16.msra.mxu0 0
  %101 = vmatprep.subr.bf16.mxu0 0
  %102 = vmatpush1.bf16.msra.mxu0 0
  %103 = vmatprep.subr.bf16.mxu0 0
  %104 = vmatpush1.bf16.msra.mxu0 0
  %105 = vmatprep.subr.bf16.mxu0 0
  %106 = vmatpush1.bf16.msra.mxu0 0
  %107 = vmatprep.subr.bf16.mxu0 0
  %108 = vmatpush1.bf16.msra.mxu0 0
  %109 = vmatprep.subr.bf16.mxu0 0
  %110 = vmatpush1.bf16.msra.mxu0 0
  %111 = vmatprep.subr.bf16.mxu0 0
  %112 = vmatpush1.bf16.msra.mxu0 0
  %113 = vmatprep.subr.bf16.mxu0 0
  %114 = vmatpush1.bf16.msra.mxu0 0
  %115 = vmatprep.subr.bf16.mxu0 0
  %116 = vmatpush1.bf16.msra.mxu0 0
  %117 = vmatprep.subr.bf16.mxu0 0
  %118 = vmatpush1.bf16.msra.mxu0 0
  %119 = vmatprep.subr.bf16.mxu0 0
  %120 = vmatpush1.bf16.msra.mxu0 0
  %121 = vmatprep.mubr.bf16.mxu0 0
  %122 = vmatmul.mubr.bf16.gmra.mrb[0].mxu0 %v33
  %v123 = vpop.f32.mrb[0].mxu0
  %v124 = vadd.f32 0.0, %v123
  %v125 = vpop.f32.mrb[0].mxu0
  %v126 = vadd.f32 0.0, %v125
  %v127 = vpop.f32.mrb[0].mxu0
  %v128 = vpop.f32.mrb[0].mxu0
  %129 = vdwg.mxu0
  %v130 = vld [vmem:[%s2] sm:$0xf]
  %132 = vset.pattern.permute.xlu0 0
  %133 = vperm.xlu0 %132, %v130
  %v134 = vpop.permute.xlu0 %133
  %v136 = vmul.f32 %v83, %v134
  %v137 = vmul.f32 %v85, %v134
  %v138 = vmul.f32 %v124, %v134
  %v139 = vmul.f32 %v126, %v134
  %v140 = vld [vmem:[%s3] sm:$0xf]
  %142 = vset.pattern.permute.xlu0 0
  %143 = vperm.xlu0 %142, %v140
  %v144 = vpop.permute.xlu0 %143
  %v146 = vadd.f32 %v136, %v144
  %v147 = vadd.f32 %v137, %v144
  %v148 = vadd.f32 %v138, %v144
  %v149 = vadd.f32 %v139, %v144
  %v150 = vmax.f32 %v146, 0.0
  %v151 = vmax.f32 %v147, 0.0
  %v152 = vmax.f32 %v148, 0.0
  %v153 = vmax.f32 %v149, 0.0
  %v158 = vcombine.low %v150, %v151
  %v159 = vcombine.low %v152, %v153
  %162 = vst [vmem:[%s4] sm:$0xff] %v158
  %163 = vst [vmem:[%s4 + $0x8] sm:$0xff] %v159
  // Predicated region
  $region18: #{octave_conv_v2_forward.7} parent=0 // pred_check
    _
  $region19: #{octave_conv_v2_forward.7} parent=0 // pred_check_branch
    %165 = sbr.rel (0) target = $region21
  $region20: #{octave_conv_v2_forward.7} parent=0 // pred_region
    _
  $region21: #{octave_conv_v2_forward.7} parent=0 // pred_fallthru
    _
  // Predicated region
  $region22: #{octave_conv_v2_forward.7} parent=0 // pred_check
    _
  $region23: #{octave_conv_v2_forward.7} parent=0 // pred_check_branch
    %167 = sbr.rel (0) target = $region25
  $region24: #{octave_conv_v2_forward.7} parent=0 // pred_region
    _
  $region25: #{octave_conv_v2_forward.7} parent=0 // pred_fallthru
    _

// kernel: octave_conv_v2_forward.9
$region0: #{octave_conv_v2_forward.9}
  #allocation0 [shape = 'u32[]', space=smem, size = 0x4, offset = 0x4, fixed_abs, tag = 'smem constant byte address 0x4 - core index']
  #allocation1 [shape = 'u32[144,128]{1,0:T(1,128)}', space=vmem, size = 0x12000, scoped, tag = 'internal scratch']
  %s0 = inlined_call_operand.vmem [shape: f32[4,128], index: 0, kind: input, shape index: {}]
  %s1 = inlined_call_operand.vmem [shape: f32[4,128], index: 1, kind: input, shape index: {}]
  %s2 = inlined_call_operand.vmem [shape: f32[4,128], index: 2, kind: input, shape index: {}]
  %s3 = inlined_call_operand.vmem [shape: f32[4,128], index: 3, kind: input, shape index: {}]
  %s4 = inlined_call_operand.vmem [shape: f32[4,128], index: 4, kind: output, shape index: {}]
  %s5 = sld [smem:[#allocation0]]
  $region26: #{octave_conv_v2_forward.9} parent=0
    _
  %s7 = ssub.s32 1, %s5
  %s8 = scalar_select 0, %s7, %s5
  // Predicated region
  $region2: #{octave_conv_v2_forward.9} parent=0 // pred_check
    _
  $region3: #{octave_conv_v2_forward.9} parent=0 // pred_check_branch
    %10 = sbr.rel (0) target = $region5
  $region4: #{octave_conv_v2_forward.9} parent=0 // pred_region
    _
  $region5: #{octave_conv_v2_forward.9} parent=0 // pred_fallthru
    _
  // Predicated region
  $region6: #{octave_conv_v2_forward.9} parent=0 // pred_check
    _
  $region7: #{octave_conv_v2_forward.9} parent=0 // pred_check_branch
    %12 = sbr.rel (0) target = $region9
  $region8: #{octave_conv_v2_forward.9} parent=0 // pred_region
    _
  $region9: #{octave_conv_v2_forward.9} parent=0 // pred_fallthru
    _
  // Predicated region
  $region10: #{octave_conv_v2_forward.9} parent=0 // pred_check
    _
  $region11: #{octave_conv_v2_forward.9} parent=0 // pred_check_branch
    %14 = sbr.rel (0) target = $region13
  $region12: #{octave_conv_v2_forward.9} parent=0 // pred_region
    _
  $region13: #{octave_conv_v2_forward.9} parent=0 // pred_fallthru
    _
  // Predicated region
  $region14: #{octave_conv_v2_forward.9} parent=0 // pred_check
    _
  $region15: #{octave_conv_v2_forward.9} parent=0 // pred_check_branch
    %16 = sbr.rel (0) target = $region17
  $region16: #{octave_conv_v2_forward.9} parent=0 // pred_region
    _
  $region17: #{octave_conv_v2_forward.9} parent=0 // pred_fallthru
    _
  %v17 = vld [vmem:[%s0] sm:$0xf]
  %v18 = vld [vmem:[%s1] sm:$0xf]
  %v19 = vadd.f32 %v17, %v18
  %v20 = vld [vmem:[%s2] sm:$0xf]
  %v21 = vadd.f32 %v19, %v20
  %v22 = vld [vmem:[%s3] sm:$0xf]
  %v23 = vadd.f32 %v21, %v22
  %v24 = vmul.f32 %v23, 0.25
  %25 = vst [vmem:[%s4] sm:$0xf] %v24
  // Predicated region
  $region18: #{octave_conv_v2_forward.9} parent=0 // pred_check
    _
  $region19: #{octave_conv_v2_forward.9} parent=0 // pred_check_branch
    %27 = sbr.rel (0) target = $region21
  $region20: #{octave_conv_v2_forward.9} parent=0 // pred_region
    _
  $region21: #{octave_conv_v2_forward.9} parent=0 // pred_fallthru
    _
  // Predicated region
  $region22: #{octave_conv_v2_forward.9} parent=0 // pred_check
    _
  $region23: #{octave_conv_v2_forward.9} parent=0 // pred_check_branch
    %29 = sbr.rel (0) target = $region25
  $region24: #{octave_conv_v2_forward.9} parent=0 // pred_region
    _
  $region25: #{octave_conv_v2_forward.9} parent=0 // pred_fallthru
    _

// kernel: octave_conv_v2_forward.10
$region0: #{octave_conv_v2_forward.10}
  #allocation0 [shape = 'u32[]', space=smem, size = 0x4, offset = 0x4, fixed_abs, tag = 'smem constant byte address 0x4 - core index']
  #allocation1 [shape = 'u32[144,128]{1,0:T(1,128)}', space=vmem, size = 0x12000, scoped, tag = 'internal scratch']
  %s0 = inlined_call_operand.vmem [shape: bf16[8,72], index: 0, kind: input, shape index: {}]
  %s1 = inlined_call_operand.vmem [shape: bf16[72,128], index: 1, kind: input, shape index: {}]
  %s2 = inlined_call_operand.vmem [shape: f32[8,1], index: 2, kind: input, shape index: {}]
  %s3 = inlined_call_operand.vmem [shape: f32[8,128], index: 3, kind: output, shape index: {}]
  %s4 = sld [smem:[#allocation0]]
  $region22: #{octave_conv_v2_forward.10} parent=0
    _
  %s6 = ssub.s32 1, %s4
  %s7 = scalar_select 0, %s6, %s4
  // Predicated region
  $region2: #{octave_conv_v2_forward.10} parent=0 // pred_check
    _
  $region3: #{octave_conv_v2_forward.10} parent=0 // pred_check_branch
    %9 = sbr.rel (0) target = $region5
  $region4: #{octave_conv_v2_forward.10} parent=0 // pred_region
    _
  $region5: #{octave_conv_v2_forward.10} parent=0 // pred_fallthru
    _
  // Predicated region
  $region6: #{octave_conv_v2_forward.10} parent=0 // pred_check
    _
  $region7: #{octave_conv_v2_forward.10} parent=0 // pred_check_branch
    %11 = sbr.rel (0) target = $region9
  $region8: #{octave_conv_v2_forward.10} parent=0 // pred_region
    _
  $region9: #{octave_conv_v2_forward.10} parent=0 // pred_fallthru
    _
  // Predicated region
  $region10: #{octave_conv_v2_forward.10} parent=0 // pred_check
    _
  $region11: #{octave_conv_v2_forward.10} parent=0 // pred_check_branch
    %13 = sbr.rel (0) target = $region13
  $region12: #{octave_conv_v2_forward.10} parent=0 // pred_region
    _
  $region13: #{octave_conv_v2_forward.10} parent=0 // pred_fallthru
    _
  %v15 = vld [vmem:[%s0] sm:$0xf]
  %v16 = vld [vmem:[%s1] sm:$0xf]
  %v17 = vld [vmem:[%s1 + $0x4] sm:$0xf]
  %v18 = vld [vmem:[%s1 + $0x8] sm:$0xf]
  %v19 = vld [vmem:[%s1 + $0xc] sm:$0xf]
  %v20 = vld [vmem:[%s1 + $0x10] sm:$0xf]
  %v21 = vld [vmem:[%s1 + $0x14] sm:$0xf]
  %v22 = vld [vmem:[%s1 + $0x18] sm:$0xf]
  %v23 = vld [vmem:[%s1 + $0x1c] sm:$0xf]
  %v24 = vld [vmem:[%s1 + $0x20] sm:$0xf]
  %v25 = vld [vmem:[%s2] sm:$0xff]
  %27 = vset.pattern.permute.xlu0 0
  %28 = vperm.xlu0 %27, %v25
  %v29 = vpop.permute.xlu0 %28
  %v40 = vunpack.c.l.b16 %v16
  %v41 = vunpack.c.l.b16 %v17
  %v42 = vunpack.c.l.b16 %v18
  %v43 = vunpack.c.l.b16 %v19
  %v44 = vunpack.c.l.b16 %v20
  %v45 = vunpack.c.l.b16 %v21
  %v46 = vunpack.c.l.b16 %v22
  %v47 = vunpack.c.l.b16 %v23
  %v48 = vunpack.c.l.b16 %v24
  %v49 = vpack.c.b16 %v41, %v40
  %v50 = vpack.c.b16 %v43, %v42
  %v51 = vpack.c.b16 %v45, %v44
  %v52 = vpack.c.b16 %v47, %v46
  %v53 = vpack.c.b16 %v48, %v48
  %vm58 = vcmask 588800
  %v60 = vsel %vm58, %v15, 0
  %vm62 = vcmask 1043456
  %v64 = vsel %vm62, %v53, 0
  %66 = vmatprep.subr.bf16.mxu0 0
  %67 = vmatpush1.bf16.msra.mxu0 %v49
  %68 = vmatprep.subr.bf16.mxu0 0
  %69 = vmatpush1.bf16.msra.mxu0 %v50
  %70 = vmatprep.subr.bf16.mxu0 0
  %71 = vmatpush1.bf16.msra.mxu0 %v51
  %72 = vmatprep.subr.bf16.mxu0 0
  %73 = vmatpush1.bf16.msra.mxu0 %v52
  %74 = vmatprep.subr.bf16.mxu0 0
  %75 = vmatpush1.bf16.msra.mxu0 %v64
  %76 = vmatprep.subr.bf16.mxu0 0
  %77 = vmatpush1.bf16.msra.mxu0 0
  %78 = vmatprep.subr.bf16.mxu0 0
  %79 = vmatpush1.bf16.msra.mxu0 0
  %80 = vmatprep.subr.bf16.mxu0 0
  %81 = vmatpush1.bf16.msra.mxu0 0
  %82 = vmatprep.subr.bf16.mxu0 0
  %83 = vmatpush1.bf16.msra.mxu0 0
  %84 = vmatprep.subr.bf16.mxu0 0
  %85 = vmatpush1.bf16.msra.mxu0 0
  %86 = vmatprep.subr.bf16.mxu0 0
  %87 = vmatpush1.bf16.msra.mxu0 0
  %88 = vmatprep.subr.bf16.mxu0 0
  %89 = vmatpush1.bf16.msra.mxu0 0
  %90 = vmatprep.subr.bf16.mxu0 0
  %91 = vmatpush1.bf16.msra.mxu0 0
  %92 = vmatprep.subr.bf16.mxu0 0
  %93 = vmatpush1.bf16.msra.mxu0 0
  %94 = vmatprep.subr.bf16.mxu0 0
  %95 = vmatpush1.bf16.msra.mxu0 0
  %96 = vmatprep.subr.bf16.mxu0 0
  %97 = vmatpush1.bf16.msra.mxu0 0
  %98 = vmatprep.mubr.bf16.mxu0 0
  %99 = vmatmul.mubr.bf16.gmra.mrb[0].mxu0 %v60
  %v100 = vpop.f32.mrb[0].mxu0
  %v101 = vadd.f32 %v29, %v100
  %v102 = vpop.f32.mrb[0].mxu0
  %v103 = vpop.f32.mrb[0].mxu0
  %v104 = vpop.f32.mrb[0].mxu0
  %105 = vdwg.mxu0
  %106 = vst [vmem:[%s3] sm:$0xff] %v101
  // Predicated region
  $region14: #{octave_conv_v2_forward.10} parent=0 // pred_check
    _
  $region15: #{octave_conv_v2_forward.10} parent=0 // pred_check_branch
    %108 = sbr.rel (0) target = $region17
  $region16: #{octave_conv_v2_forward.10} parent=0 // pred_region
    _
  $region17: #{octave_conv_v2_forward.10} parent=0 // pred_fallthru
    _
  // Predicated region
  $region18: #{octave_conv_v2_forward.10} parent=0 // pred_check
    _
  $region19: #{octave_conv_v2_forward.10} parent=0 // pred_check_branch
    %110 = sbr.rel (0) target = $region21
  $region20: #{octave_conv_v2_forward.10} parent=0 // pred_region
    _
  $region21: #{octave_conv_v2_forward.10} parent=0 // pred_fallthru
    _

// kernel: octave_conv_v2_forward.11
$region0: #{octave_conv_v2_forward.11}
  #allocation0 [shape = 'u32[]', space=smem, size = 0x4, offset = 0x4, fixed_abs, tag = 'smem constant byte address 0x4 - core index']
  #allocation1 [shape = 'u32[144,128]{1,0:T(1,128)}', space=vmem, size = 0x12000, scoped, tag = 'internal scratch']
  %s0 = inlined_call_operand.vmem [shape: bf16[4,36], index: 0, kind: input, shape index: {}]
  %s1 = inlined_call_operand.vmem [shape: bf16[36,512], index: 1, kind: input, shape index: {}]
  %s2 = inlined_call_operand.vmem [shape: f32[4,1], index: 2, kind: input, shape index: {}]
  %s3 = inlined_call_operand.vmem [shape: f32[4,512], index: 3, kind: input, shape index: {}]
  %s4 = inlined_call_operand.vmem [shape: f32[4,512], index: 4, kind: output, shape index: {}]
  %s5 = sld [smem:[#allocation0]]
  $region26: #{octave_conv_v2_forward.11} parent=0
    _
  %s7 = ssub.s32 1, %s5
  %s8 = scalar_select 0, %s7, %s5
  // Predicated region
  $region2: #{octave_conv_v2_forward.11} parent=0 // pred_check
    _
  $region3: #{octave_conv_v2_forward.11} parent=0 // pred_check_branch
    %10 = sbr.rel (0) target = $region5
  $region4: #{octave_conv_v2_forward.11} parent=0 // pred_region
    _
  $region5: #{octave_conv_v2_forward.11} parent=0 // pred_fallthru
    _
  // Predicated region
  $region6: #{octave_conv_v2_forward.11} parent=0 // pred_check
    _
  $region7: #{octave_conv_v2_forward.11} parent=0 // pred_check_branch
    %12 = sbr.rel (0) target = $region9
  $region8: #{octave_conv_v2_forward.11} parent=0 // pred_region
    _
  $region9: #{octave_conv_v2_forward.11} parent=0 // pred_fallthru
    _
  // Predicated region
  $region10: #{octave_conv_v2_forward.11} parent=0 // pred_check
    _
  $region11: #{octave_conv_v2_forward.11} parent=0 // pred_check_branch
    %14 = sbr.rel (0) target = $region13
  $region12: #{octave_conv_v2_forward.11} parent=0 // pred_region
    _
  $region13: #{octave_conv_v2_forward.11} parent=0 // pred_fallthru
    _
  // Predicated region
  $region14: #{octave_conv_v2_forward.11} parent=0 // pred_check
    _
  $region15: #{octave_conv_v2_forward.11} parent=0 // pred_check_branch
    %16 = sbr.rel (0) target = $region17
  $region16: #{octave_conv_v2_forward.11} parent=0 // pred_region
    _
  $region17: #{octave_conv_v2_forward.11} parent=0 // pred_fallthru
    _
  %v18 = vld [vmem:[%s0] sm:$0x3]
  %v19 = vld [vmem:[%s1] sm:$0xff]
  %v20 = vld [vmem:[%s1 + $0x8] sm:$0xff]
  %v21 = vld [vmem:[%s1 + $0x10] sm:$0xff]
  %v22 = vld [vmem:[%s1 + $0x18] sm:$0xff]
  %v23 = vld [vmem:[%s1 + $0x20] sm:$0xff]
  %v24 = vld [vmem:[%s1 + $0x28] sm:$0xff]
  %v25 = vld [vmem:[%s1 + $0x30] sm:$0xff]
  %v26 = vld [vmem:[%s1 + $0x38] sm:$0xff]
  %v27 = vld [vmem:[%s1 + $0x40] sm:$0x33]
  %v28 = vld [vmem:[%s1 + $0x48] sm:$0x33]
  %v29 = vld [vmem:[%s2] sm:$0xf]
  %31 = vset.pattern.permute.xlu0 0
  %32 = vperm.xlu0 %31, %v29
  %v33 = vpop.permute.xlu0 %32
  %v45 = vunpack.c.l.b16 %v19
  %v46 = vunpack.c.h.b16 %v19
  %v47 = vunpack.c.l.b16 %v20
  %v48 = vunpack.c.h.b16 %v20
  %v49 = vunpack.c.l.b16 %v21
  %v50 = vunpack.c.h.b16 %v21
  %v51 = vunpack.c.l.b16 %v22
  %v52 = vunpack.c.h.b16 %v22
  %v53 = vunpack.c.l.b16 %v23
  %v54 = vunpack.c.h.b16 %v23
  %v55 = vunpack.c.l.b16 %v24
  %v56 = vunpack.c.h.b16 %v24
  %v57 = vunpack.c.l.b16 %v25
  %v58 = vunpack.c.h.b16 %v25
  %v59 = vunpack.c.l.b16 %v26
  %v60 = vunpack.c.h.b16 %v26
  %v61 = vunpack.c.l.b16 %v27
  %v62 = vunpack.c.h.b16 %v27
  %v63 = vunpack.c.l.b16 %v28
  %v64 = vunpack.c.h.b16 %v28
  %v65 = vpack.c.b16 %v49, %v45
  %v66 = vpack.c.b16 %v50, %v46
  %v67 = vpack.c.b16 %v51, %v47
  %v68 = vpack.c.b16 %v52, %v48
  %v69 = vpack.c.b16 %v57, %v53
  %v70 = vpack.c.b16 %v58, %v54
  %v71 = vpack.c.b16 %v59, %v55
  %v72 = vpack.c.b16 %v60, %v56
  %v73 = vpack.c.b16 %v61, %v61
  %v74 = vpack.c.b16 %v62, %v62
  %v75 = vpack.c.b16 %v63, %v63
  %v76 = vpack.c.b16 %v64, %v64
  %vm85 = vcmask 293888
  %v87 = vsel %vm85, %v18, 0
  %vm89 = vcmask 1041408
  %v91 = vsel %vm89, %v73, 0
  %v94 = vsel %vm89, %v74, 0
  %v97 = vsel %vm89, %v75, 0
  %v100 = vsel %vm89, %v76, 0
  %102 = vmatprep.subr.bf16.mxu0 %v66
  %103 = vmatpush1.bf16.msra.mxu0 %v65
  %104 = vmatprep.subr.bf16.mxu0 %v70
  %105 = vmatpush1.bf16.msra.mxu0 %v69
  %106 = vmatprep.subr.bf16.mxu0 %v94
  %107 = vmatpush1.bf16.msra.mxu0 %v91
  %108 = vmatprep.subr.bf16.mxu0 0
  %109 = vmatpush1.bf16.msra.mxu0 0
  %110 = vmatprep.subr.bf16.mxu0 0
  %111 = vmatpush1.bf16.msra.mxu0 0
  %112 = vmatprep.subr.bf16.mxu0 0
  %113 = vmatpush1.bf16.msra.mxu0 0
  %114 = vmatprep.subr.bf16.mxu0 0
  %115 = vmatpush1.bf16.msra.mxu0 0
  %116 = vmatprep.subr.bf16.mxu0 0
  %117 = vmatpush1.bf16.msra.mxu0 0
  %118 = vmatprep.subr.bf16.mxu0 0
  %119 = vmatpush1.bf16.msra.mxu0 0
  %120 = vmatprep.subr.bf16.mxu0 0
  %121 = vmatpush1.bf16.msra.mxu0 0
  %122 = vmatprep.subr.bf16.mxu0 0
  %123 = vmatpush1.bf16.msra.mxu0 0
  %124 = vmatprep.subr.bf16.mxu0 0
  %125 = vmatpush1.bf16.msra.mxu0 0
  %126 = vmatprep.subr.bf16.mxu0 0
  %127 = vmatpush1.bf16.msra.mxu0 0
  %128 = vmatprep.subr.bf16.mxu0 0
  %129 = vmatpush1.bf16.msra.mxu0 0
  %130 = vmatprep.subr.bf16.mxu0 0
  %131 = vmatpush1.bf16.msra.mxu0 0
  %132 = vmatprep.subr.bf16.mxu0 0
  %133 = vmatpush1.bf16.msra.mxu0 0
  %134 = vmatprep.mubr.bf16.mxu0 0
  %135 = vmatmul.mubr.bf16.gmra.mrb[0].mxu0 %v87
  %v136 = vpop.f32.mrb[0].mxu0
  %v137 = vadd.f32 %v33, %v136
  %v138 = vpop.f32.mrb[0].mxu0
  %v139 = vadd.f32 %v33, %v138
  %v140 = vpop.f32.mrb[0].mxu0
  %v141 = vpop.f32.mrb[0].mxu0
  %142 = vdwg.mxu0
  %143 = vmatprep.subr.bf16.mxu0 %v68
  %144 = vmatpush1.bf16.msra.mxu0 %v67
  %145 = vmatprep.subr.bf16.mxu0 %v72
  %146 = vmatpush1.bf16.msra.mxu0 %v71
  %147 = vmatprep.subr.bf16.mxu0 %v100
  %148 = vmatpush1.bf16.msra.mxu0 %v97
  %149 = vmatprep.subr.bf16.mxu0 0
  %150 = vmatpush1.bf16.msra.mxu0 0
  %151 = vmatprep.subr.bf16.mxu0 0
  %152 = vmatpush1.bf16.msra.mxu0 0
  %153 = vmatprep.subr.bf16.mxu0 0
  %154 = vmatpush1.bf16.msra.mxu0 0
  %155 = vmatprep.subr.bf16.mxu0 0
  %156 = vmatpush1.bf16.msra.mxu0 0
  %157 = vmatprep.subr.bf16.mxu0 0
  %158 = vmatpush1.bf16.msra.mxu0 0
  %159 = vmatprep.subr.bf16.mxu0 0
  %160 = vmatpush1.bf16.msra.mxu0 0
  %161 = vmatprep.subr.bf16.mxu0 0
  %162 = vmatpush1.bf16.msra.mxu0 0
  %163 = vmatprep.subr.bf16.mxu0 0
  %164 = vmatpush1.bf16.msra.mxu0 0
  %165 = vmatprep.subr.bf16.mxu0 0
  %166 = vmatpush1.bf16.msra.mxu0 0
  %167 = vmatprep.subr.bf16.mxu0 0
  %168 = vmatpush1.bf16.msra.mxu0 0
  %169 = vmatprep.subr.bf16.mxu0 0
  %170 = vmatpush1.bf16.msra.mxu0 0
  %171 = vmatprep.subr.bf16.mxu0 0
  %172 = vmatpush1.bf16.msra.mxu0 0
  %173 = vmatprep.subr.bf16.mxu0 0
  %174 = vmatpush1.bf16.msra.mxu0 0
  %175 = vmatprep.mubr.bf16.mxu0 0
  %176 = vmatmul.mubr.bf16.gmra.mrb[0].mxu0 %v87
  %v177 = vpop.f32.mrb[0].mxu0
  %v178 = vadd.f32 %v33, %v177
  %v179 = vpop.f32.mrb[0].mxu0
  %v180 = vadd.f32 %v33, %v179
  %v181 = vpop.f32.mrb[0].mxu0
  %v182 = vpop.f32.mrb[0].mxu0
  %183 = vdwg.mxu0
  %v184 = vld [vmem:[%s3] sm:$0xff]
  %v185 = vld [vmem:[%s3 + $0x8] sm:$0xff]
  %v188 = vcombine.high %v184, %v184
  %v189 = vcombine.high %v185, %v185
  %v192 = vadd.f32 %v137, %v184
  %v193 = vadd.f32 %v139, %v188
  %v194 = vadd.f32 %v178, %v185
  %v195 = vadd.f32 %v180, %v189
  %v200 = vcombine.low %v192, %v193
  %v201 = vcombine.low %v194, %v195
  %204 = vst [vmem:[%s4] sm:$0xff] %v200
  %205 = vst [vmem:[%s4 + $0x8] sm:$0xff] %v201
  // Predicated region
  $region18: #{octave_conv_v2_forward.11} parent=0 // pred_check
    _
  $region19: #{octave_conv_v2_forward.11} parent=0 // pred_check_branch
    %207 = sbr.rel (0) target = $region21
  $region20: #{octave_conv_v2_forward.11} parent=0 // pred_region
    _
  $region21: #{octave_conv_v2_forward.11} parent=0 // pred_fallthru
    _
  // Predicated region
  $region22: #{octave_conv_v2_forward.11} parent=0 // pred_check
    _
  $region23: #{octave_conv_v2_forward.11} parent=0 // pred_check_branch
    %209 = sbr.rel (0) target = $region25
  $region24: #{octave_conv_v2_forward.11} parent=0 // pred_region
    _
  $region25: #{octave_conv_v2_forward.11} parent=0 // pred_fallthru
    _

</llo_original>
